<compile_context>
chip_gen: v7x
topology: tpu7x:2x2x1
jax: 0.10.0
libtpu: 0.0.40
codegen_flags: <defaults>
</compile_context>

<pallas_src>
import jax
import jax.numpy as jnp
from jax.experimental import pallas as pl
from jax.experimental.pallas import tpu as pltpu

MODEL_OUT_DIM = 384      # D
TASK_NUM = 10            # number of binary tasks
NUM_MLP_LAYERS = 3       # two hidden Linear(384,384)+ReLU, then Linear(384,TASK_NUM)
LANE = 128


def _head_kernel(mask_ref, x_ref,
                 w1_ref, b1_ref, w2_ref, b2_ref, w3_ref, b3_ref,
                 out_ref):
    """One batch tile: masked mean pooling + 3-layer MLP (output padded to 128 lanes)."""
    mask = mask_ref[...]                                   # (BT, L)   f32
    x = x_ref[...]                                         # (BT, L, D) f32

    # Masked mean pooling over the sequence axis (dim=-2 in PyTorch).
    pooled = jnp.sum(x * mask[:, :, None], axis=1)         # (BT, D)
    denom = jnp.sum(mask, axis=1, keepdims=True)           # (BT, 1)
    graph = pooled * pl.reciprocal(denom, approx=True)     # EUP reciprocal, frees VALU

    # MLP: Linear + ReLU, Linear + ReLU, Linear (last layer lane-dense padded).
    h = jnp.dot(graph, w1_ref[...], preferred_element_type=jnp.float32) + b1_ref[...]
    h = jnp.maximum(h, 0.0)
    h = jnp.dot(h, w2_ref[...], preferred_element_type=jnp.float32) + b2_ref[...]
    h = jnp.maximum(h, 0.0)
    out = jnp.dot(h, w3_ref[...], preferred_element_type=jnp.float32) + b3_ref[...]
    out_ref[...] = out.astype(out_ref.dtype)


def _choose_b_tile(B, L, D, target_tile_bytes=4 << 20):
    """Rows per grid step: ~4 MiB of node_repr per tile so the double-buffered input
    plus resident weights stays well under the scoped VMEM budget on every TPU
    generation, while keeping the MXU M dimension large and sublane-aligned."""
    rows = max(8, target_tile_bytes // (L * D * 4))
    if rows >= LANE:
        rows = (rows // LANE) * LANE       # MXU-friendly M (multiple of 128)
    else:
        rows = (rows // 8) * 8             # at least sublane-aligned
    b_rounded = ((B + 7) // 8) * 8         # don't pad the batch more than needed
    return max(8, min(rows, b_rounded))


def multi_binary_classify_head(seq_mask, node_repr, params, *, b_tile=None):
    """seq_mask: (B, L) f32, node_repr: (B, L, D) f32 -> (B, task_num) f32."""
    B, L, D = node_repr.shape
    w1, b1, w2, b2, w3, b3 = params
    task_num = w3.shape[1]

    # Lane-dense output: zero-pad the last Linear to a multiple of 128 columns.
    out_pad = max(LANE, ((task_num + LANE - 1) // LANE) * LANE)
    w3p = jnp.zeros((D, out_pad), w3.dtype).at[:, :task_num].set(w3)
    b3p = jnp.zeros((1, out_pad), b3.dtype).at[:, :task_num].set(b3)

    if b_tile is None:
        b_tile = _choose_b_tile(B, L, D)
    b_pad = ((B + b_tile - 1) // b_tile) * b_tile

    if b_pad != B:
        node_repr = jnp.concatenate(
            [node_repr, jnp.zeros((b_pad - B, L, D), node_repr.dtype)], axis=0)
        # Pad mask rows with ones so padded rows stay finite (they are sliced off).
        seq_mask = jnp.concatenate(
            [seq_mask, jnp.ones((b_pad - B, L), seq_mask.dtype)], axis=0)

    grid = (b_pad // b_tile,)

    cost = pl.CostEstimate(
        flops=2 * b_pad * (L * D + D * D + D * D + D * out_pad),
        transcendentals=b_pad,
        bytes_accessed=(b_pad * L * D * 4 + b_pad * L * 4
                        + 2 * D * D * 4 + D * out_pad * 4 + out_pad * 4
                        + b_pad * out_pad * 4),
    )

    out = pl.pallas_call(
        _head_kernel,
        out_shape=jax.ShapeDtypeStruct((b_pad, out_pad), jnp.float32),
        grid=grid,
        in_specs=[
            pl.BlockSpec((b_tile, L), lambda i: (i, 0)),          # seq_mask tile
            pl.BlockSpec((b_tile, L, D), lambda i: (i, 0, 0)),    # node_repr tile
            pl.BlockSpec((D, D), lambda i: (0, 0)),               # w1 (resident)
            pl.BlockSpec((1, D), lambda i: (0, 0)),               # b1
            pl.BlockSpec((D, D), lambda i: (0, 0)),               # w2
            pl.BlockSpec((1, D), lambda i: (0, 0)),               # b2
            pl.BlockSpec((D, out_pad), lambda i: (0, 0)),         # w3 (lane-padded)
            pl.BlockSpec((1, out_pad), lambda i: (0, 0)),         # b3 (lane-padded)
        ],
        out_specs=pl.BlockSpec((b_tile, out_pad), lambda i: (i, 0)),
        compiler_params=pltpu.CompilerParams(
            dimension_semantics=("parallel",)),
        cost_estimate=cost,
    )(seq_mask, node_repr, w1, b1, w2, b2, w3p, b3p)

    return out[:B, :task_num]


def init_params(key, model_out_dim=MODEL_OUT_DIM, task_num=TASK_NUM):
    """Deterministic PyTorch-Linear-style init (uniform(-1/sqrt(fan_in), 1/sqrt(fan_in)))."""
    dims = [model_out_dim, model_out_dim, model_out_dim, task_num]  # num_mlp_layers=3
    params = []
    for i in range(len(dims) - 1):
        fan_in, fan_out = dims[i], dims[i + 1]
        key, kw, kb = jax.random.split(key, 3)
        bound = 1.0 / jnp.sqrt(fan_in)
        w = jax.random.uniform(kw, (fan_in, fan_out), jnp.float32, -bound, bound)
        b = jax.random.uniform(kb, (1, fan_out), jnp.float32, -bound, bound)
        params += [w, b]
    return tuple(params)


def _reference(seq_mask, node_repr, params):
    w1, b1, w2, b2, w3, b3 = params
    masked = node_repr * seq_mask[:, :, None]
    graph = masked.sum(axis=1) / seq_mask.sum(axis=1, keepdims=True)
    h = jnp.maximum(graph @ w1 + b1, 0.0)
    h = jnp.maximum(h @ w2 + b2, 0.0)
    return h @ w3 + b3


if __name__ == "__main__":
    B, L, D = 8, 16, MODEL_OUT_DIM
    key = jax.random.PRNGKey(0)
    k_x, k_m, k_p = jax.random.split(key, 3)

    node_repr = jax.random.normal(k_x, (B, L, D), jnp.float32)
    # Binary mask with at least one valid position per sequence.
    # TODO(synk): all-zero mask rows divide by zero (same as the PyTorch module).
    seq_mask = (jax.random.uniform(k_m, (B, L)) > 0.3).astype(jnp.float32)
    seq_mask = seq_mask.at[:, 0].set(1.0)

    params = init_params(k_p)

    pred = multi_binary_classify_head(seq_mask, node_repr, params)
    pred = jax.block_until_ready(pred)

    ref = _reference(seq_mask, node_repr, params)
    assert pred.shape == (B, TASK_NUM)
    # Slightly looser tolerance: the kernel uses the EUP approx reciprocal for 1/denom.
    assert jnp.allclose(pred, ref, atol=2e-3, rtol=2e-3), "mismatch vs reference"

    print("KERNEL_OK")
</pallas_src>

<mosaic_0001>
module attributes {stable_mosaic.version = 11 : i64} {
  func.func @_head_kernel(%arg0: i32, %arg1: memref<8x16xf32, #tpu.memory_space<vmem>>, %arg2: memref<8x16x384xf32, #tpu.memory_space<vmem>>, %arg3: memref<384x384xf32, #tpu.memory_space<vmem>>, %arg4: memref<1x384xf32, #tpu.memory_space<vmem>>, %arg5: memref<384x384xf32, #tpu.memory_space<vmem>>, %arg6: memref<1x384xf32, #tpu.memory_space<vmem>>, %arg7: memref<384x128xf32, #tpu.memory_space<vmem>>, %arg8: memref<1x128xf32, #tpu.memory_space<vmem>>, %arg9: memref<8x128xf32, #tpu.memory_space<vmem>>) attributes {dimension_semantics = [#tpu.dimension_semantics<parallel>], iteration_bounds = array<i64: 1>, scalar_prefetch = 0 : i64, scratch_operands = 0 : i64, tpu.core_type = #tpu.core_type<tc>, window_params = [{transform_indices = @transform_0, window_bounds = array<i64: 8, 16>}, {transform_indices = @transform_1, window_bounds = array<i64: 8, 16, 384>}, {pipeline_mode = #tpu.pipeline_mode<synchronous>, transform_indices = @transform_2, window_bounds = array<i64: 384, 384>}, {pipeline_mode = #tpu.pipeline_mode<synchronous>, transform_indices = @transform_3, window_bounds = array<i64: 1, 384>}, {pipeline_mode = #tpu.pipeline_mode<synchronous>, transform_indices = @transform_4, window_bounds = array<i64: 384, 384>}, {pipeline_mode = #tpu.pipeline_mode<synchronous>, transform_indices = @transform_5, window_bounds = array<i64: 1, 384>}, {pipeline_mode = #tpu.pipeline_mode<synchronous>, transform_indices = @transform_6, window_bounds = array<i64: 384, 128>}, {pipeline_mode = #tpu.pipeline_mode<synchronous>, transform_indices = @transform_7, window_bounds = array<i64: 1, 128>}, {transform_indices = @transform_8, window_bounds = array<i64: 8, 128>}]} {
    %c0 = arith.constant 0 : index
    %c0_0 = arith.constant 0 : index
    %0 = vector.load %arg1[%c0, %c0_0] : memref<8x16xf32, #tpu.memory_space<vmem>>, vector<8x16xf32>
    %c0_1 = arith.constant 0 : index
    %c0_2 = arith.constant 0 : index
    %c0_3 = arith.constant 0 : index
    %1 = vector.load %arg2[%c0_1, %c0_2, %c0_3] : memref<8x16x384xf32, #tpu.memory_space<vmem>>, vector<8x16x384xf32>
    %2 = vector.shape_cast %0 : vector<8x16xf32> to vector<8x16x1xf32>
    %3 = vector.broadcast %2 : vector<8x16x1xf32> to vector<8x16x384xf32>
    %4 = arith.mulf %1, %3 : vector<8x16x384xf32>
    %cst = arith.constant dense<0.000000e+00> : vector<8x384xf32>
    %5 = vector.multi_reduction <add>, %4, %cst [1] : vector<8x16x384xf32> to vector<8x384xf32>
    %cst_4 = arith.constant dense<0.000000e+00> : vector<8xf32>
    %6 = vector.multi_reduction <add>, %0, %cst_4 [1] : vector<8x16xf32> to vector<8xf32>
    %7 = vector.shape_cast %6 : vector<8xf32> to vector<8x1xf32>
    %8 = tpu.reciprocal %7 {approx = true} : vector<8x1xf32> -> vector<8x1xf32>
    %9 = vector.broadcast %8 : vector<8x1xf32> to vector<8x384xf32>
    %10 = arith.mulf %5, %9 : vector<8x384xf32>
    %c0_5 = arith.constant 0 : index
    %c0_6 = arith.constant 0 : index
    %11 = vector.load %arg3[%c0_5, %c0_6] : memref<384x384xf32, #tpu.memory_space<vmem>>, vector<384x384xf32>
    %cst_7 = arith.constant dense<0.000000e+00> : vector<8x384xf32>
    %12 = tpu.matmul %10, %11, %cst_7 {dimension_numbers = #tpu.dot_dimension_numbers<[1], [0], [0], [1], [0, 0, 1, 1], [], []>} : vector<8x384xf32>, vector<384x384xf32>, vector<8x384xf32> -> vector<8x384xf32>
    %c0_8 = arith.constant 0 : index
    %c0_9 = arith.constant 0 : index
    %13 = vector.load %arg4[%c0_8, %c0_9] : memref<1x384xf32, #tpu.memory_space<vmem>>, vector<1x384xf32>
    %14 = vector.broadcast %13 : vector<1x384xf32> to vector<8x384xf32>
    %15 = arith.addf %12, %14 : vector<8x384xf32>
    %cst_10 = arith.constant 0.000000e+00 : f32
    %16 = vector.broadcast %cst_10 : f32 to vector<8x384xf32>
    %17 = arith.maximumf %15, %16 : vector<8x384xf32>
    %c0_11 = arith.constant 0 : index
    %c0_12 = arith.constant 0 : index
    %18 = vector.load %arg5[%c0_11, %c0_12] : memref<384x384xf32, #tpu.memory_space<vmem>>, vector<384x384xf32>
    %cst_13 = arith.constant dense<0.000000e+00> : vector<8x384xf32>
    %19 = tpu.matmul %17, %18, %cst_13 {dimension_numbers = #tpu.dot_dimension_numbers<[1], [0], [0], [1], [0, 0, 1, 1], [], []>} : vector<8x384xf32>, vector<384x384xf32>, vector<8x384xf32> -> vector<8x384xf32>
    %c0_14 = arith.constant 0 : index
    %c0_15 = arith.constant 0 : index
    %20 = vector.load %arg6[%c0_14, %c0_15] : memref<1x384xf32, #tpu.memory_space<vmem>>, vector<1x384xf32>
    %21 = vector.broadcast %20 : vector<1x384xf32> to vector<8x384xf32>
    %22 = arith.addf %19, %21 : vector<8x384xf32>
    %cst_16 = arith.constant 0.000000e+00 : f32
    %23 = vector.broadcast %cst_16 : f32 to vector<8x384xf32>
    %24 = arith.maximumf %22, %23 : vector<8x384xf32>
    %c0_17 = arith.constant 0 : index
    %c0_18 = arith.constant 0 : index
    %25 = vector.load %arg7[%c0_17, %c0_18] : memref<384x128xf32, #tpu.memory_space<vmem>>, vector<384x128xf32>
    %cst_19 = arith.constant dense<0.000000e+00> : vector<8x128xf32>
    %26 = tpu.matmul %24, %25, %cst_19 {dimension_numbers = #tpu.dot_dimension_numbers<[1], [0], [0], [1], [0, 0, 1, 1], [], []>} : vector<8x384xf32>, vector<384x128xf32>, vector<8x128xf32> -> vector<8x128xf32>
    %c0_20 = arith.constant 0 : index
    %c0_21 = arith.constant 0 : index
    %27 = vector.load %arg8[%c0_20, %c0_21] : memref<1x128xf32, #tpu.memory_space<vmem>>, vector<1x128xf32>
    %28 = vector.broadcast %27 : vector<1x128xf32> to vector<8x128xf32>
    %29 = arith.addf %26, %28 : vector<8x128xf32>
    %c0_22 = arith.constant 0 : index
    %c0_23 = arith.constant 0 : index
    %30 = vector.load %arg9[%c0_22, %c0_23] : memref<8x128xf32, #tpu.memory_space<vmem>>, vector<8x128xf32>
    tpu.vector_store %arg9[%c0_22, %c0_23], %29 {strides = array<i32>} : memref<8x128xf32, #tpu.memory_space<vmem>>, vector<8x128xf32>,
    return
  }
  func.func @transform_0(%arg0: i32) -> (i32, i32) {
    %c0_i32 = arith.constant 0 : i32
    %c0_i32_0 = arith.constant 0 : i32
    return %arg0, %c0_i32 : i32, i32
  }
  func.func @transform_1(%arg0: i32) -> (i32, i32, i32) {
    %c0_i32 = arith.constant 0 : i32
    %c0_i32_0 = arith.constant 0 : i32
    %c0_i32_1 = arith.constant 0 : i32
    return %arg0, %c0_i32, %c0_i32_0 : i32, i32, i32
  }
  func.func @transform_2(%arg0: i32) -> (i32, i32) {
    %c0_i32 = arith.constant 0 : i32
    %c0_i32_0 = arith.constant 0 : i32
    %c0_i32_1 = arith.constant 0 : i32
    return %c0_i32, %c0_i32_0 : i32, i32
  }
  func.func @transform_3(%arg0: i32) -> (i32, i32) {
    %c0_i32 = arith.constant 0 : i32
    %c0_i32_0 = arith.constant 0 : i32
    %c0_i32_1 = arith.constant 0 : i32
    return %c0_i32, %c0_i32_0 : i32, i32
  }
  func.func @transform_4(%arg0: i32) -> (i32, i32) {
    %c0_i32 = arith.constant 0 : i32
    %c0_i32_0 = arith.constant 0 : i32
    %c0_i32_1 = arith.constant 0 : i32
    return %c0_i32, %c0_i32_0 : i32, i32
  }
  func.func @transform_5(%arg0: i32) -> (i32, i32) {
    %c0_i32 = arith.constant 0 : i32
    %c0_i32_0 = arith.constant 0 : i32
    %c0_i32_1 = arith.constant 0 : i32
    return %c0_i32, %c0_i32_0 : i32, i32
  }
  func.func @transform_6(%arg0: i32) -> (i32, i32) {
    %c0_i32 = arith.constant 0 : i32
    %c0_i32_0 = arith.constant 0 : i32
    %c0_i32_1 = arith.constant 0 : i32
    return %c0_i32, %c0_i32_0 : i32, i32
  }
  func.func @transform_7(%arg0: i32) -> (i32, i32) {
    %c0_i32 = arith.constant 0 : i32
    %c0_i32_0 = arith.constant 0 : i32
    %c0_i32_1 = arith.constant 0 : i32
    return %c0_i32, %c0_i32_0 : i32, i32
  }
  func.func @transform_8(%arg0: i32) -> (i32, i32) {
    %c0_i32 = arith.constant 0 : i32
    %c0_i32_0 = arith.constant 0 : i32
    return %arg0, %c0_i32 : i32, i32
  }
}

</mosaic_0001>

<llo_original>
// kernel: tpu_custom_call.1
$region0: #{tpu_custom_call.1}
  #allocation0 [shape = 'u32[]', space=smem, size = 0x4, offset = 0x4, fixed_abs, tag = 'smem constant byte address 0x4 - core index']
  #allocation1 [shape = 'u32[144,128]{1,0:T(1,128)}', space=vmem, size = 0x12000, scoped, tag = 'internal scratch']
  %s0 = inlined_call_operand.hbm [shape: f32[8,16], index: 0, kind: input, shape index: {}]
  %s1 = inlined_call_operand.hbm [shape: f32[8,16,384], index: 1, kind: input, shape index: {}]
  %s2 = inlined_call_operand.hbm [shape: f32[384,384], index: 2, kind: input, shape index: {}]
  %s3 = inlined_call_operand.vmem [shape: f32[1,384], index: 3, kind: input, shape index: {}]
  %s4 = inlined_call_operand.hbm [shape: f32[384,384], index: 4, kind: input, shape index: {}]
  %s5 = inlined_call_operand.vmem [shape: f32[1,384], index: 5, kind: input, shape index: {}]
  %s6 = inlined_call_operand.hbm [shape: f32[384,128], index: 6, kind: input, shape index: {}]
  %s7 = inlined_call_operand.vmem [shape: f32[1,128], index: 7, kind: input, shape index: {}]
  %s8 = inlined_call_operand.hbm [shape: f32[8,128], index: 8, kind: output, shape index: {}]
  %s9 = sld [smem:[#allocation0]]
  $region62: #{tpu_custom_call.1} parent=0
    _
  %s11 = ssub.s32 1, %s9
  %s12 = scalar_select 0, %s11, %s9
  $region1: #{tpu_custom_call.1} parent=0
    #allocation2 [shape = 'u8[4096]{0}', space=vmem, size = 0x1000, scoped, tag = 'input window, operand 0, single buffered']
    #allocation3 [shape = 's32[1]{0}', space=sflag, size = 0x4, scoped, tag = 'scoped memory for tpu_custom_call.1']
    #allocation4 [shape = 's32[1]{0}', space=sflag, size = 0x4, scoped, tag = 'scoped memory for tpu_custom_call.1']
    #allocation5 [shape = 'u8[196608]{0}', space=vmem, size = 0x30000, scoped, tag = 'input window, operand 1, single buffered']
    #allocation6 [shape = 's32[1]{0}', space=sflag, size = 0x4, scoped, tag = 'scoped memory for tpu_custom_call.1']
    #allocation7 [shape = 'u8[589824]{0}', space=vmem, size = 0x90000, scoped, tag = 'input window, operand 2, single buffered']
    #allocation8 [shape = 'u8[589824]{0}', space=vmem, size = 0x90000, scoped, tag = 'input window, operand 4, single buffered']
    #allocation9 [shape = 's32[1]{0}', space=sflag, size = 0x4, scoped, tag = 'scoped memory for tpu_custom_call.1']
    #allocation10 [shape = 'u8[196608]{0}', space=vmem, size = 0x30000, scoped, tag = 'input window, operand 6, single buffered']
    #allocation11 [shape = 'u8[4096]{0}', space=vmem, size = 0x1000, scoped, tag = 'output window, operand 0, single buffered']
    %13 = vsyncpa [#allocation3], 0
    %14 = vsyncpa [#allocation6], 0
    %15 = vsyncpa [#allocation9], 0
    %16 = vsyncpa [#allocation4], 0
    // Predicated region
    $region2: #{tpu_custom_call.1} parent=1 // pred_check
      _
    $region3: #{tpu_custom_call.1} parent=1 // pred_check_branch
      %18 = sbr.rel (0) target = $region5
    $region4: #{tpu_custom_call.1} parent=1 // pred_region
      %s20 = ssub.s32 128, 128
      %21 = vsyncadd [#allocation3], %s20
      %s23 = sshll.u32 [#allocation2], 4
      %s24 = int_to_ptr.vmem [resolvable:$true] %s23
      %26 = dma.hbm_to_vmem [thread:$0]  %s0, 128, %s24, [#allocation3]
    $region5: #{tpu_custom_call.1} parent=1 // pred_fallthru
      _
    // Predicated region
    $region6: #{tpu_custom_call.1} parent=1 // pred_check
      _
    $region7: #{tpu_custom_call.1} parent=1 // pred_check_branch
      %28 = sbr.rel (0) target = $region9
    $region8: #{tpu_custom_call.1} parent=1 // pred_region
      %s30 = ssub.s32 6144, 6144
      %31 = vsyncadd [#allocation6], %s30
      %s32 = sshll.u32 [#allocation5], 4
      %s33 = int_to_ptr.vmem [resolvable:$true] %s32
      %38 = dma.hbm_to_vmem [thread:$0]  %s1, 6144, %s33, [#allocation6], 384, 384, 24
    $region9: #{tpu_custom_call.1} parent=1 // pred_fallthru
      _
    // Predicated region
    $region10: #{tpu_custom_call.1} parent=1 // pred_check
      _
    $region11: #{tpu_custom_call.1} parent=1 // pred_check_branch
      %40 = sbr.rel (0) target = $region13
    $region12: #{tpu_custom_call.1} parent=1 // pred_region
      %s42 = ssub.s32 18432, 18432
      %43 = vsyncadd [#allocation6], %s42
      %s44 = sshll.u32 [#allocation7], 4
      %s45 = int_to_ptr.vmem [resolvable:$true] %s44
      %50 = dma.hbm_to_vmem [thread:$0]  %s2, 18432, %s45, [#allocation6], 384, 384, 24
    $region13: #{tpu_custom_call.1} parent=1 // pred_fallthru
      _
    // Predicated region
    $region14: #{tpu_custom_call.1} parent=1 // pred_check
      _
    $region15: #{tpu_custom_call.1} parent=1 // pred_check_branch
      %52 = sbr.rel (0) target = $region17
    $region16: #{tpu_custom_call.1} parent=1 // pred_region
      _
    $region17: #{tpu_custom_call.1} parent=1 // pred_fallthru
      _
    // Predicated region
    $region18: #{tpu_custom_call.1} parent=1 // pred_check
      _
    $region19: #{tpu_custom_call.1} parent=1 // pred_check_branch
      %54 = sbr.rel (0) target = $region21
    $region20: #{tpu_custom_call.1} parent=1 // pred_region
      %s56 = ssub.s32 18432, 18432
      %57 = vsyncadd [#allocation9], %s56
      %s58 = sshll.u32 [#allocation8], 4
      %s59 = int_to_ptr.vmem [resolvable:$true] %s58
      %64 = dma.hbm_to_vmem [thread:$0]  %s4, 18432, %s59, [#allocation9], 384, 384, 24
    $region21: #{tpu_custom_call.1} parent=1 // pred_fallthru
      _
    // Predicated region
    $region22: #{tpu_custom_call.1} parent=1 // pred_check
      _
    $region23: #{tpu_custom_call.1} parent=1 // pred_check_branch
      %66 = sbr.rel (0) target = $region25
    $region24: #{tpu_custom_call.1} parent=1 // pred_region
      _
    $region25: #{tpu_custom_call.1} parent=1 // pred_fallthru
      _
    // Predicated region
    $region26: #{tpu_custom_call.1} parent=1 // pred_check
      _
    $region27: #{tpu_custom_call.1} parent=1 // pred_check_branch
      %68 = sbr.rel (0) target = $region29
    $region28: #{tpu_custom_call.1} parent=1 // pred_region
      %s70 = ssub.s32 6144, 6144
      %71 = vsyncadd [#allocation9], %s70
      %s72 = sshll.u32 [#allocation10], 4
      %s73 = int_to_ptr.vmem [resolvable:$true] %s72
      %78 = dma.hbm_to_vmem [thread:$0]  %s6, 6144, %s73, [#allocation9], 128, 128, 8
    $region29: #{tpu_custom_call.1} parent=1 // pred_fallthru
      _
    // Predicated region
    $region30: #{tpu_custom_call.1} parent=1 // pred_check
      _
    $region31: #{tpu_custom_call.1} parent=1 // pred_check_branch
      %80 = sbr.rel (0) target = $region33
    $region32: #{tpu_custom_call.1} parent=1 // pred_region
      _
    $region33: #{tpu_custom_call.1} parent=1 // pred_fallthru
      _
    // Predicated region
    $region34: #{tpu_custom_call.1} parent=1 // pred_check
      _
    $region35: #{tpu_custom_call.1} parent=1 // pred_check_branch
      %82 = sbr.rel (0) target = $region37
    $region36: #{tpu_custom_call.1} parent=1 // pred_region
      %83 = dma.done [#allocation3], 128
    $region37: #{tpu_custom_call.1} parent=1 // pred_fallthru
      _
    // Predicated region
    $region38: #{tpu_custom_call.1} parent=1 // pred_check
      _
    $region39: #{tpu_custom_call.1} parent=1 // pred_check_branch
      %85 = sbr.rel (0) target = $region41
    $region40: #{tpu_custom_call.1} parent=1 // pred_region
      %86 = dma.done [#allocation6], 6144
    $region41: #{tpu_custom_call.1} parent=1 // pred_fallthru
      _
    // Predicated region
    $region42: #{tpu_custom_call.1} parent=1 // pred_check
      _
    $region43: #{tpu_custom_call.1} parent=1 // pred_check_branch
      %88 = sbr.rel (0) target = $region45
    $region44: #{tpu_custom_call.1} parent=1 // pred_region
      %89 = dma.done [#allocation6], 18432
    $region45: #{tpu_custom_call.1} parent=1 // pred_fallthru
      _
    // Predicated region
    $region46: #{tpu_custom_call.1} parent=1 // pred_check
      _
    $region47: #{tpu_custom_call.1} parent=1 // pred_check_branch
      %91 = sbr.rel (0) target = $region49
    $region48: #{tpu_custom_call.1} parent=1 // pred_region
      %92 = dma.done [#allocation9], 18432
    $region49: #{tpu_custom_call.1} parent=1 // pred_fallthru
      _
    // Predicated region
    $region50: #{tpu_custom_call.1} parent=1 // pred_check
      _
    $region51: #{tpu_custom_call.1} parent=1 // pred_check_branch
      %94 = sbr.rel (0) target = $region53
    $region52: #{tpu_custom_call.1} parent=1 // pred_region
      %95 = dma.done [#allocation9], 6144
    $region53: #{tpu_custom_call.1} parent=1 // pred_fallthru
      _
    %v96 = vld [vmem:[#allocation2] sm:$0xff]
    %v97 = vld [vmem:[#allocation5] sm:$0xff]
    %v98 = vld [vmem:[#allocation5 + $0x8] sm:$0xff]
    %v99 = vld [vmem:[#allocation5 + $0x10] sm:$0xff]
    %v100 = vld [vmem:[#allocation5 + $0x18] sm:$0xff]
    %v101 = vld [vmem:[#allocation5 + $0x20] sm:$0xff]
    %v102 = vld [vmem:[#allocation5 + $0x28] sm:$0xff]
    %v103 = vld [vmem:[#allocation5 + $0x30] sm:$0xff]
    %v104 = vld [vmem:[#allocation5 + $0x38] sm:$0xff]
    %v105 = vld [vmem:[#allocation5 + $0x40] sm:$0xff]
    %v106 = vld [vmem:[#allocation5 + $0x48] sm:$0xff]
    %v107 = vld [vmem:[#allocation5 + $0x50] sm:$0xff]
    %v108 = vld [vmem:[#allocation5 + $0x58] sm:$0xff]
    %v109 = vld [vmem:[#allocation5 + $0x60] sm:$0xff]
    %v110 = vld [vmem:[#allocation5 + $0x68] sm:$0xff]
    %v111 = vld [vmem:[#allocation5 + $0x70] sm:$0xff]
    %v112 = vld [vmem:[#allocation5 + $0x78] sm:$0xff]
    %v113 = vld [vmem:[#allocation5 + $0x80] sm:$0xff]
    %v114 = vld [vmem:[#allocation5 + $0x88] sm:$0xff]
    %v115 = vld [vmem:[#allocation5 + $0x90] sm:$0xff]
    %v116 = vld [vmem:[#allocation5 + $0x98] sm:$0xff]
    %v117 = vld [vmem:[#allocation5 + $0xa0] sm:$0xff]
    %v118 = vld [vmem:[#allocation5 + $0xa8] sm:$0xff]
    %v119 = vld [vmem:[#allocation5 + $0xb0] sm:$0xff]
    %v120 = vld [vmem:[#allocation5 + $0xb8] sm:$0xff]
    %v121 = vld [vmem:[#allocation5 + $0xc0] sm:$0xff]
    %v122 = vld [vmem:[#allocation5 + $0xc8] sm:$0xff]
    %v123 = vld [vmem:[#allocation5 + $0xd0] sm:$0xff]
    %v124 = vld [vmem:[#allocation5 + $0xd8] sm:$0xff]
    %v125 = vld [vmem:[#allocation5 + $0xe0] sm:$0xff]
    %v126 = vld [vmem:[#allocation5 + $0xe8] sm:$0xff]
    %v127 = vld [vmem:[#allocation5 + $0xf0] sm:$0xff]
    %v128 = vld [vmem:[#allocation5 + $0xf8] sm:$0xff]
    %v129 = vld [vmem:[#allocation5 + $0x100] sm:$0xff]
    %v130 = vld [vmem:[#allocation5 + $0x108] sm:$0xff]
    %v131 = vld [vmem:[#allocation5 + $0x110] sm:$0xff]
    %v132 = vld [vmem:[#allocation5 + $0x118] sm:$0xff]
    %v133 = vld [vmem:[#allocation5 + $0x120] sm:$0xff]
    %v134 = vld [vmem:[#allocation5 + $0x128] sm:$0xff]
    %v135 = vld [vmem:[#allocation5 + $0x130] sm:$0xff]
    %v136 = vld [vmem:[#allocation5 + $0x138] sm:$0xff]
    %v137 = vld [vmem:[#allocation5 + $0x140] sm:$0xff]
    %v138 = vld [vmem:[#allocation5 + $0x148] sm:$0xff]
    %v139 = vld [vmem:[#allocation5 + $0x150] sm:$0xff]
    %v140 = vld [vmem:[#allocation5 + $0x158] sm:$0xff]
    %v141 = vld [vmem:[#allocation5 + $0x160] sm:$0xff]
    %v142 = vld [vmem:[#allocation5 + $0x168] sm:$0xff]
    %v143 = vld [vmem:[#allocation5 + $0x170] sm:$0xff]
    %v144 = vld [vmem:[#allocation5 + $0x178] sm:$0xff]
    %v145 = vlaneseq
    %v146 = vshrl.u32 %v145, 7
    %v147 = vsub.s32 0, %v146
    %v148 = vrot.slane %v96, %v147
    %150 = vbcast.lane.b32.xlu0 %v148, 256
    %v151 = vpop.permute.xlu0 %150
    %s153 = sor.u32 256, 8
    %154 = vbcast.lane.b32.xlu0 %v148, %s153
    %v155 = vpop.permute.xlu0 %154
    %v156 = vlaneseq
    %v157 = vshrl.u32 %v156, 7
    %v158 = vsub.s32 1, %v157
    %v159 = vrot.slane %v96, %v158
    %161 = vbcast.lane.b32.xlu0 %v159, 256
    %v162 = vpop.permute.xlu0 %161
    %s164 = sor.u32 256, 8
    %165 = vbcast.lane.b32.xlu0 %v159, %s164
    %v166 = vpop.permute.xlu0 %165
    %v167 = vlaneseq
    %v168 = vshrl.u32 %v167, 7
    %v169 = vsub.s32 2, %v168
    %v170 = vrot.slane %v96, %v169
    %172 = vbcast.lane.b32.xlu0 %v170, 256
    %v173 = vpop.permute.xlu0 %172
    %s175 = sor.u32 256, 8
    %176 = vbcast.lane.b32.xlu0 %v170, %s175
    %v177 = vpop.permute.xlu0 %176
    %v178 = vlaneseq
    %v179 = vshrl.u32 %v178, 7
    %v180 = vsub.s32 3, %v179
    %v181 = vrot.slane %v96, %v180
    %183 = vbcast.lane.b32.xlu0 %v181, 256
    %v184 = vpop.permute.xlu0 %183
    %s186 = sor.u32 256, 8
    %187 = vbcast.lane.b32.xlu0 %v181, %s186
    %v188 = vpop.permute.xlu0 %187
    %v189 = vlaneseq
    %v190 = vshrl.u32 %v189, 7
    %v191 = vsub.s32 4, %v190
    %v192 = vrot.slane %v96, %v191
    %194 = vbcast.lane.b32.xlu0 %v192, 256
    %v195 = vpop.permute.xlu0 %194
    %s197 = sor.u32 256, 8
    %198 = vbcast.lane.b32.xlu0 %v192, %s197
    %v199 = vpop.permute.xlu0 %198
    %v200 = vlaneseq
    %v201 = vshrl.u32 %v200, 7
    %v202 = vsub.s32 5, %v201
    %v203 = vrot.slane %v96, %v202
    %205 = vbcast.lane.b32.xlu0 %v203, 256
    %v206 = vpop.permute.xlu0 %205
    %s208 = sor.u32 256, 8
    %209 = vbcast.lane.b32.xlu0 %v203, %s208
    %v210 = vpop.permute.xlu0 %209
    %v211 = vlaneseq
    %v212 = vshrl.u32 %v211, 7
    %v213 = vsub.s32 6, %v212
    %v214 = vrot.slane %v96, %v213
    %216 = vbcast.lane.b32.xlu0 %v214, 256
    %v217 = vpop.permute.xlu0 %216
    %s219 = sor.u32 256, 8
    %220 = vbcast.lane.b32.xlu0 %v214, %s219
    %v221 = vpop.permute.xlu0 %220
    %v222 = vlaneseq
    %v223 = vshrl.u32 %v222, 7
    %v224 = vsub.s32 7, %v223
    %v225 = vrot.slane %v96, %v224
    %227 = vbcast.lane.b32.xlu0 %v225, 256
    %v228 = vpop.permute.xlu0 %227
    %s230 = sor.u32 256, 8
    %231 = vbcast.lane.b32.xlu0 %v225, %s230
    %v232 = vpop.permute.xlu0 %231
    %v233 = vmul.f32 %v97, %v151
    %v234 = vmul.f32 %v98, %v151
    %v235 = vmul.f32 %v99, %v151
    %v236 = vmul.f32 %v100, %v155
    %v237 = vmul.f32 %v101, %v155
    %v238 = vmul.f32 %v102, %v155
    %v239 = vmul.f32 %v103, %v162
    %v240 = vmul.f32 %v104, %v162
    %v241 = vmul.f32 %v105, %v162
    %v242 = vmul.f32 %v106, %v166
    %v243 = vmul.f32 %v107, %v166
    %v244 = vmul.f32 %v108, %v166
    %v245 = vmul.f32 %v109, %v173
    %v246 = vmul.f32 %v110, %v173
    %v247 = vmul.f32 %v111, %v173
    %v248 = vmul.f32 %v112, %v177
    %v249 = vmul.f32 %v113, %v177
    %v250 = vmul.f32 %v114, %v177
    %v251 = vmul.f32 %v115, %v184
    %v252 = vmul.f32 %v116, %v184
    %v253 = vmul.f32 %v117, %v184
    %v254 = vmul.f32 %v118, %v188
    %v255 = vmul.f32 %v119, %v188
    %v256 = vmul.f32 %v120, %v188
    %v257 = vmul.f32 %v121, %v195
    %v258 = vmul.f32 %v122, %v195
    %v259 = vmul.f32 %v123, %v195
    %v260 = vmul.f32 %v124, %v199
    %v261 = vmul.f32 %v125, %v199
    %v262 = vmul.f32 %v126, %v199
    %v263 = vmul.f32 %v127, %v206
    %v264 = vmul.f32 %v128, %v206
    %v265 = vmul.f32 %v129, %v206
    %v266 = vmul.f32 %v130, %v210
    %v267 = vmul.f32 %v131, %v210
    %v268 = vmul.f32 %v132, %v210
    %v269 = vmul.f32 %v133, %v217
    %v270 = vmul.f32 %v134, %v217
    %v271 = vmul.f32 %v135, %v217
    %v272 = vmul.f32 %v136, %v221
    %v273 = vmul.f32 %v137, %v221
    %v274 = vmul.f32 %v138, %v221
    %v275 = vmul.f32 %v139, %v228
    %v276 = vmul.f32 %v140, %v228
    %v277 = vmul.f32 %v141, %v228
    %v278 = vmul.f32 %v142, %v232
    %v279 = vmul.f32 %v143, %v232
    %v280 = vmul.f32 %v144, %v232
    %v281 = vadd.f32 %v233, %v236
    %v282 = vrot.slane %v281, 4
    %v283 = vadd.f32 %v281, %v282
    %v284 = vrot.slane %v283, 2
    %v285 = vadd.f32 %v283, %v284
    %v286 = vrot.slane %v285, 1
    %v287 = vadd.f32 %v285, %v286
    %v288 = vadd.f32 %v234, %v237
    %v289 = vrot.slane %v288, 4
    %v290 = vadd.f32 %v288, %v289
    %v291 = vrot.slane %v290, 2
    %v292 = vadd.f32 %v290, %v291
    %v293 = vrot.slane %v292, 1
    %v294 = vadd.f32 %v292, %v293
    %v295 = vadd.f32 %v235, %v238
    %v296 = vrot.slane %v295, 4
    %v297 = vadd.f32 %v295, %v296
    %v298 = vrot.slane %v297, 2
    %v299 = vadd.f32 %v297, %v298
    %v300 = vrot.slane %v299, 1
    %v301 = vadd.f32 %v299, %v300
    %v302 = vadd.f32 %v239, %v242
    %v303 = vrot.slane %v302, 4
    %v304 = vadd.f32 %v302, %v303
    %v305 = vrot.slane %v304, 2
    %v306 = vadd.f32 %v304, %v305
    %v307 = vrot.slane %v306, 1
    %v308 = vadd.f32 %v306, %v307
    %v309 = vadd.f32 %v240, %v243
    %v310 = vrot.slane %v309, 4
    %v311 = vadd.f32 %v309, %v310
    %v312 = vrot.slane %v311, 2
    %v313 = vadd.f32 %v311, %v312
    %v314 = vrot.slane %v313, 1
    %v315 = vadd.f32 %v313, %v314
    %v316 = vadd.f32 %v241, %v244
    %v317 = vrot.slane %v316, 4
    %v318 = vadd.f32 %v316, %v317
    %v319 = vrot.slane %v318, 2
    %v320 = vadd.f32 %v318, %v319
    %v321 = vrot.slane %v320, 1
    %v322 = vadd.f32 %v320, %v321
    %v323 = vadd.f32 %v245, %v248
    %v324 = vrot.slane %v323, 4
    %v325 = vadd.f32 %v323, %v324
    %v326 = vrot.slane %v325, 2
    %v327 = vadd.f32 %v325, %v326
    %v328 = vrot.slane %v327, 1
    %v329 = vadd.f32 %v327, %v328
    %v330 = vadd.f32 %v246, %v249
    %v331 = vrot.slane %v330, 4
    %v332 = vadd.f32 %v330, %v331
    %v333 = vrot.slane %v332, 2
    %v334 = vadd.f32 %v332, %v333
    %v335 = vrot.slane %v334, 1
    %v336 = vadd.f32 %v334, %v335
    %v337 = vadd.f32 %v247, %v250
    %v338 = vrot.slane %v337, 4
    %v339 = vadd.f32 %v337, %v338
    %v340 = vrot.slane %v339, 2
    %v341 = vadd.f32 %v339, %v340
    %v342 = vrot.slane %v341, 1
    %v343 = vadd.f32 %v341, %v342
    %v344 = vadd.f32 %v251, %v254
    %v345 = vrot.slane %v344, 4
    %v346 = vadd.f32 %v344, %v345
    %v347 = vrot.slane %v346, 2
    %v348 = vadd.f32 %v346, %v347
    %v349 = vrot.slane %v348, 1
    %v350 = vadd.f32 %v348, %v349
    %v351 = vadd.f32 %v252, %v255
    %v352 = vrot.slane %v351, 4
    %v353 = vadd.f32 %v351, %v352
    %v354 = vrot.slane %v353, 2
    %v355 = vadd.f32 %v353, %v354
    %v356 = vrot.slane %v355, 1
    %v357 = vadd.f32 %v355, %v356
    %v358 = vadd.f32 %v253, %v256
    %v359 = vrot.slane %v358, 4
    %v360 = vadd.f32 %v358, %v359
    %v361 = vrot.slane %v360, 2
    %v362 = vadd.f32 %v360, %v361
    %v363 = vrot.slane %v362, 1
    %v364 = vadd.f32 %v362, %v363
    %v365 = vadd.f32 %v257, %v260
    %v366 = vrot.slane %v365, 4
    %v367 = vadd.f32 %v365, %v366
    %v368 = vrot.slane %v367, 2
    %v369 = vadd.f32 %v367, %v368
    %v370 = vrot.slane %v369, 1
    %v371 = vadd.f32 %v369, %v370
    %v372 = vadd.f32 %v258, %v261
    %v373 = vrot.slane %v372, 4
    %v374 = vadd.f32 %v372, %v373
    %v375 = vrot.slane %v374, 2
    %v376 = vadd.f32 %v374, %v375
    %v377 = vrot.slane %v376, 1
    %v378 = vadd.f32 %v376, %v377
    %v379 = vadd.f32 %v259, %v262
    %v380 = vrot.slane %v379, 4
    %v381 = vadd.f32 %v379, %v380
    %v382 = vrot.slane %v381, 2
    %v383 = vadd.f32 %v381, %v382
    %v384 = vrot.slane %v383, 1
    %v385 = vadd.f32 %v383, %v384
    %v386 = vadd.f32 %v263, %v266
    %v387 = vrot.slane %v386, 4
    %v388 = vadd.f32 %v386, %v387
    %v389 = vrot.slane %v388, 2
    %v390 = vadd.f32 %v388, %v389
    %v391 = vrot.slane %v390, 1
    %v392 = vadd.f32 %v390, %v391
    %v393 = vadd.f32 %v264, %v267
    %v394 = vrot.slane %v393, 4
    %v395 = vadd.f32 %v393, %v394
    %v396 = vrot.slane %v395, 2
    %v397 = vadd.f32 %v395, %v396
    %v398 = vrot.slane %v397, 1
    %v399 = vadd.f32 %v397, %v398
    %v400 = vadd.f32 %v265, %v268
    %v401 = vrot.slane %v400, 4
    %v402 = vadd.f32 %v400, %v401
    %v403 = vrot.slane %v402, 2
    %v404 = vadd.f32 %v402, %v403
    %v405 = vrot.slane %v404, 1
    %v406 = vadd.f32 %v404, %v405
    %v407 = vadd.f32 %v269, %v272
    %v408 = vrot.slane %v407, 4
    %v409 = vadd.f32 %v407, %v408
    %v410 = vrot.slane %v409, 2
    %v411 = vadd.f32 %v409, %v410
    %v412 = vrot.slane %v411, 1
    %v413 = vadd.f32 %v411, %v412
    %v414 = vadd.f32 %v270, %v273
    %v415 = vrot.slane %v414, 4
    %v416 = vadd.f32 %v414, %v415
    %v417 = vrot.slane %v416, 2
    %v418 = vadd.f32 %v416, %v417
    %v419 = vrot.slane %v418, 1
    %v420 = vadd.f32 %v418, %v419
    %v421 = vadd.f32 %v271, %v274
    %v422 = vrot.slane %v421, 4
    %v423 = vadd.f32 %v421, %v422
    %v424 = vrot.slane %v423, 2
    %v425 = vadd.f32 %v423, %v424
    %v426 = vrot.slane %v425, 1
    %v427 = vadd.f32 %v425, %v426
    %v428 = vadd.f32 %v275, %v278
    %v429 = vrot.slane %v428, 4
    %v430 = vadd.f32 %v428, %v429
    %v431 = vrot.slane %v430, 2
    %v432 = vadd.f32 %v430, %v431
    %v433 = vrot.slane %v432, 1
    %v434 = vadd.f32 %v432, %v433
    %v435 = vadd.f32 %v276, %v279
    %v436 = vrot.slane %v435, 4
    %v437 = vadd.f32 %v435, %v436
    %v438 = vrot.slane %v437, 2
    %v439 = vadd.f32 %v437, %v438
    %v440 = vrot.slane %v439, 1
    %v441 = vadd.f32 %v439, %v440
    %v442 = vadd.f32 %v277, %v280
    %v443 = vrot.slane %v442, 4
    %v444 = vadd.f32 %v442, %v443
    %v445 = vrot.slane %v444, 2
    %v446 = vadd.f32 %v444, %v445
    %v447 = vrot.slane %v446, 1
    %v448 = vadd.f32 %v446, %v447
    %vm449 = vcmask 130048
    %v450 = vsel %vm449, %v96, 0.0
    %451 = vadd.xlane.f32.xlu0 %v450
    %v452 = vpop.xlane.xlu0 %451
    %v453 = vrcp.pop %v452
    %v455 = vrot.slane %v453, 1
    %v456 = vrot.slane %v453, 2
    %v457 = vrot.slane %v453, 3
    %v458 = vrot.slane %v453, 4
    %v459 = vrot.slane %v453, 5
    %v460 = vrot.slane %v453, 6
    %v461 = vrot.slane %v453, 7
    %v470 = vmul.f32 %v287, %v453
    %v471 = vmul.f32 %v294, %v453
    %v472 = vmul.f32 %v301, %v453
    %v473 = vmul.f32 %v308, %v455
    %v474 = vmul.f32 %v315, %v455
    %v475 = vmul.f32 %v322, %v455
    %v476 = vmul.f32 %v329, %v456
    %v477 = vmul.f32 %v336, %v456
    %v478 = vmul.f32 %v343, %v456
    %v479 = vmul.f32 %v350, %v457
    %v480 = vmul.f32 %v357, %v457
    %v481 = vmul.f32 %v364, %v457
    %v482 = vmul.f32 %v371, %v458
    %v483 = vmul.f32 %v378, %v458
    %v484 = vmul.f32 %v385, %v458
    %v485 = vmul.f32 %v392, %v459
    %v486 = vmul.f32 %v399, %v459
    %v487 = vmul.f32 %v406, %v459
    %v488 = vmul.f32 %v413, %v460
    %v489 = vmul.f32 %v420, %v460
    %v490 = vmul.f32 %v427, %v460
    %v491 = vmul.f32 %v434, %v461
    %v492 = vmul.f32 %v441, %v461
    %v493 = vmul.f32 %v448, %v461
    %v494 = vld [vmem:[#allocation7] sm:$0xff]
    %v495 = vld [vmem:[#allocation7 + $0x8] sm:$0xff]
    %v496 = vld [vmem:[#allocation7 + $0x10] sm:$0xff]
    %v497 = vld [vmem:[#allocation7 + $0x18] sm:$0xff]
    %v498 = vld [vmem:[#allocation7 + $0x20] sm:$0xff]
    %v499 = vld [vmem:[#allocation7 + $0x28] sm:$0xff]
    %v500 = vld [vmem:[#allocation7 + $0x30] sm:$0xff]
    %v501 = vld [vmem:[#allocation7 + $0x38] sm:$0xff]
    %v502 = vld [vmem:[#allocation7 + $0x40] sm:$0xff]
    %v503 = vld [vmem:[#allocation7 + $0x48] sm:$0xff]
    %v504 = vld [vmem:[#allocation7 + $0x50] sm:$0xff]
    %v505 = vld [vmem:[#allocation7 + $0x58] sm:$0xff]
    %v506 = vld [vmem:[#allocation7 + $0x60] sm:$0xff]
    %v507 = vld [vmem:[#allocation7 + $0x68] sm:$0xff]
    %v508 = vld [vmem:[#allocation7 + $0x70] sm:$0xff]
    %v509 = vld [vmem:[#allocation7 + $0x78] sm:$0xff]
    %v510 = vld [vmem:[#allocation7 + $0x80] sm:$0xff]
    %v511 = vld [vmem:[#allocation7 + $0x88] sm:$0xff]
    %v512 = vld [vmem:[#allocation7 + $0x90] sm:$0xff]
    %v513 = vld [vmem:[#allocation7 + $0x98] sm:$0xff]
    %v514 = vld [vmem:[#allocation7 + $0xa0] sm:$0xff]
    %v515 = vld [vmem:[#allocation7 + $0xa8] sm:$0xff]
    %v516 = vld [vmem:[#allocation7 + $0xb0] sm:$0xff]
    %v517 = vld [vmem:[#allocation7 + $0xb8] sm:$0xff]
    %v518 = vld [vmem:[#allocation7 + $0xc0] sm:$0xff]
    %v519 = vld [vmem:[#allocation7 + $0xc8] sm:$0xff]
    %v520 = vld [vmem:[#allocation7 + $0xd0] sm:$0xff]
    %v521 = vld [vmem:[#allocation7 + $0xd8] sm:$0xff]
    %v522 = vld [vmem:[#allocation7 + $0xe0] sm:$0xff]
    %v523 = vld [vmem:[#allocation7 + $0xe8] sm:$0xff]
    %v524 = vld [vmem:[#allocation7 + $0xf0] sm:$0xff]
    %v525 = vld [vmem:[#allocation7 + $0xf8] sm:$0xff]
    %v526 = vld [vmem:[#allocation7 + $0x100] sm:$0xff]
    %v527 = vld [vmem:[#allocation7 + $0x108] sm:$0xff]
    %v528 = vld [vmem:[#allocation7 + $0x110] sm:$0xff]
    %v529 = vld [vmem:[#allocation7 + $0x118] sm:$0xff]
    %v530 = vld [vmem:[#allocation7 + $0x120] sm:$0xff]
    %v531 = vld [vmem:[#allocation7 + $0x128] sm:$0xff]
    %v532 = vld [vmem:[#allocation7 + $0x130] sm:$0xff]
    %v533 = vld [vmem:[#allocation7 + $0x138] sm:$0xff]
    %v534 = vld [vmem:[#allocation7 + $0x140] sm:$0xff]
    %v535 = vld [vmem:[#allocation7 + $0x148] sm:$0xff]
    %v536 = vld [vmem:[#allocation7 + $0x150] sm:$0xff]
    %v537 = vld [vmem:[#allocation7 + $0x158] sm:$0xff]
    %v538 = vld [vmem:[#allocation7 + $0x160] sm:$0xff]
    %v539 = vld [vmem:[#allocation7 + $0x168] sm:$0xff]
    %v540 = vld [vmem:[#allocation7 + $0x170] sm:$0xff]
    %v541 = vld [vmem:[#allocation7 + $0x178] sm:$0xff]
    %v542 = vld [vmem:[#allocation7 + $0x180] sm:$0xff]
    %v543 = vld [vmem:[#allocation7 + $0x188] sm:$0xff]
    %v544 = vld [vmem:[#allocation7 + $0x190] sm:$0xff]
    %v545 = vld [vmem:[#allocation7 + $0x198] sm:$0xff]
    %v546 = vld [vmem:[#allocation7 + $0x1a0] sm:$0xff]
    %v547 = vld [vmem:[#allocation7 + $0x1a8] sm:$0xff]
    %v548 = vld [vmem:[#allocation7 + $0x1b0] sm:$0xff]
    %v549 = vld [vmem:[#allocation7 + $0x1b8] sm:$0xff]
    %v550 = vld [vmem:[#allocation7 + $0x1c0] sm:$0xff]
    %v551 = vld [vmem:[#allocation7 + $0x1c8] sm:$0xff]
    %v552 = vld [vmem:[#allocation7 + $0x1d0] sm:$0xff]
    %v553 = vld [vmem:[#allocation7 + $0x1d8] sm:$0xff]
    %v554 = vld [vmem:[#allocation7 + $0x1e0] sm:$0xff]
    %v555 = vld [vmem:[#allocation7 + $0x1e8] sm:$0xff]
    %v556 = vld [vmem:[#allocation7 + $0x1f0] sm:$0xff]
    %v557 = vld [vmem:[#allocation7 + $0x1f8] sm:$0xff]
    %v558 = vld [vmem:[#allocation7 + $0x200] sm:$0xff]
    %v559 = vld [vmem:[#allocation7 + $0x208] sm:$0xff]
    %v560 = vld [vmem:[#allocation7 + $0x210] sm:$0xff]
    %v561 = vld [vmem:[#allocation7 + $0x218] sm:$0xff]
    %v562 = vld [vmem:[#allocation7 + $0x220] sm:$0xff]
    %v563 = vld [vmem:[#allocation7 + $0x228] sm:$0xff]
    %v564 = vld [vmem:[#allocation7 + $0x230] sm:$0xff]
    %v565 = vld [vmem:[#allocation7 + $0x238] sm:$0xff]
    %v566 = vld [vmem:[#allocation7 + $0x240] sm:$0xff]
    %v567 = vld [vmem:[#allocation7 + $0x248] sm:$0xff]
    %v568 = vld [vmem:[#allocation7 + $0x250] sm:$0xff]
    %v569 = vld [vmem:[#allocation7 + $0x258] sm:$0xff]
    %v570 = vld [vmem:[#allocation7 + $0x260] sm:$0xff]
    %v571 = vld [vmem:[#allocation7 + $0x268] sm:$0xff]
    %v572 = vld [vmem:[#allocation7 + $0x270] sm:$0xff]
    %v573 = vld [vmem:[#allocation7 + $0x278] sm:$0xff]
    %v574 = vld [vmem:[#allocation7 + $0x280] sm:$0xff]
    %v575 = vld [vmem:[#allocation7 + $0x288] sm:$0xff]
    %v576 = vld [vmem:[#allocation7 + $0x290] sm:$0xff]
    %v577 = vld [vmem:[#allocation7 + $0x298] sm:$0xff]
    %v578 = vld [vmem:[#allocation7 + $0x2a0] sm:$0xff]
    %v579 = vld [vmem:[#allocation7 + $0x2a8] sm:$0xff]
    %v580 = vld [vmem:[#allocation7 + $0x2b0] sm:$0xff]
    %v581 = vld [vmem:[#allocation7 + $0x2b8] sm:$0xff]
    %v582 = vld [vmem:[#allocation7 + $0x2c0] sm:$0xff]
    %v583 = vld [vmem:[#allocation7 + $0x2c8] sm:$0xff]
    %v584 = vld [vmem:[#allocation7 + $0x2d0] sm:$0xff]
    %v585 = vld [vmem:[#allocation7 + $0x2d8] sm:$0xff]
    %v586 = vld [vmem:[#allocation7 + $0x2e0] sm:$0xff]
    %v587 = vld [vmem:[#allocation7 + $0x2e8] sm:$0xff]
    %v588 = vld [vmem:[#allocation7 + $0x2f0] sm:$0xff]
    %v589 = vld [vmem:[#allocation7 + $0x2f8] sm:$0xff]
    %v590 = vld [vmem:[#allocation7 + $0x300] sm:$0xff]
    %v591 = vld [vmem:[#allocation7 + $0x308] sm:$0xff]
    %v592 = vld [vmem:[#allocation7 + $0x310] sm:$0xff]
    %v593 = vld [vmem:[#allocation7 + $0x318] sm:$0xff]
    %v594 = vld [vmem:[#allocation7 + $0x320] sm:$0xff]
    %v595 = vld [vmem:[#allocation7 + $0x328] sm:$0xff]
    %v596 = vld [vmem:[#allocation7 + $0x330] sm:$0xff]
    %v597 = vld [vmem:[#allocation7 + $0x338] sm:$0xff]
    %v598 = vld [vmem:[#allocation7 + $0x340] sm:$0xff]
    %v599 = vld [vmem:[#allocation7 + $0x348] sm:$0xff]
    %v600 = vld [vmem:[#allocation7 + $0x350] sm:$0xff]
    %v601 = vld [vmem:[#allocation7 + $0x358] sm:$0xff]
    %v602 = vld [vmem:[#allocation7 + $0x360] sm:$0xff]
    %v603 = vld [vmem:[#allocation7 + $0x368] sm:$0xff]
    %v604 = vld [vmem:[#allocation7 + $0x370] sm:$0xff]
    %v605 = vld [vmem:[#allocation7 + $0x378] sm:$0xff]
    %v606 = vld [vmem:[#allocation7 + $0x380] sm:$0xff]
    %v607 = vld [vmem:[#allocation7 + $0x388] sm:$0xff]
    %v608 = vld [vmem:[#allocation7 + $0x390] sm:$0xff]
    %v609 = vld [vmem:[#allocation7 + $0x398] sm:$0xff]
    %v610 = vld [vmem:[#allocation7 + $0x3a0] sm:$0xff]
    %v611 = vld [vmem:[#allocation7 + $0x3a8] sm:$0xff]
    %v612 = vld [vmem:[#allocation7 + $0x3b0] sm:$0xff]
    %v613 = vld [vmem:[#allocation7 + $0x3b8] sm:$0xff]
    %v614 = vld [vmem:[#allocation7 + $0x3c0] sm:$0xff]
    %v615 = vld [vmem:[#allocation7 + $0x3c8] sm:$0xff]
    %v616 = vld [vmem:[#allocation7 + $0x3d0] sm:$0xff]
    %v617 = vld [vmem:[#allocation7 + $0x3d8] sm:$0xff]
    %v618 = vld [vmem:[#allocation7 + $0x3e0] sm:$0xff]
    %v619 = vld [vmem:[#allocation7 + $0x3e8] sm:$0xff]
    %v620 = vld [vmem:[#allocation7 + $0x3f0] sm:$0xff]
    %v621 = vld [vmem:[#allocation7 + $0x3f8] sm:$0xff]
    %v622 = vld [vmem:[#allocation7 + $0x400] sm:$0xff]
    %v623 = vld [vmem:[#allocation7 + $0x408] sm:$0xff]
    %v624 = vld [vmem:[#allocation7 + $0x410] sm:$0xff]
    %v625 = vld [vmem:[#allocation7 + $0x418] sm:$0xff]
    %v626 = vld [vmem:[#allocation7 + $0x420] sm:$0xff]
    %v627 = vld [vmem:[#allocation7 + $0x428] sm:$0xff]
    %v628 = vld [vmem:[#allocation7 + $0x430] sm:$0xff]
    %v629 = vld [vmem:[#allocation7 + $0x438] sm:$0xff]
    %v630 = vld [vmem:[#allocation7 + $0x440] sm:$0xff]
    %v631 = vld [vmem:[#allocation7 + $0x448] sm:$0xff]
    %v632 = vld [vmem:[#allocation7 + $0x450] sm:$0xff]
    %v633 = vld [vmem:[#allocation7 + $0x458] sm:$0xff]
    %v634 = vld [vmem:[#allocation7 + $0x460] sm:$0xff]
    %v635 = vld [vmem:[#allocation7 + $0x468] sm:$0xff]
    %v636 = vld [vmem:[#allocation7 + $0x470] sm:$0xff]
    %v637 = vld [vmem:[#allocation7 + $0x478] sm:$0xff]
    %v638 = vld [vmem:[%s3] sm:$0x7]
    %v640 = vlaneseq
    %v641 = vshrl.u32 %v640, 7
    %v642 = vsub.s32 0, %v641
    %v643 = vrot.slane %v638, %v642
    %v644 = vlaneseq
    %v645 = vshrl.u32 %v644, 7
    %v646 = vsub.s32 1, %v645
    %v647 = vrot.slane %v638, %v646
    %v648 = vlaneseq
    %v649 = vshrl.u32 %v648, 7
    %v650 = vsub.s32 2, %v649
    %v651 = vrot.slane %v638, %v650
    %v679 = vrot.slane %v473, 7
    %vm680 = vcmask 1041409
    %v681 = vsel %vm680, %v679, %v470
    %v682 = vrot.slane %v476, 6
    %vm683 = vcmask 1042434
    %v684 = vsel %vm683, %v682, %v681
    %v685 = vrot.slane %v479, 5
    %vm686 = vcmask 1043459
    %v687 = vsel %vm686, %v685, %v684
    %v688 = vrot.slane %v482, 4
    %vm689 = vcmask 1044484
    %v690 = vsel %vm689, %v688, %v687
    %v691 = vrot.slane %v485, 3
    %vm692 = vcmask 1045509
    %v693 = vsel %vm692, %v691, %v690
    %v694 = vrot.slane %v488, 2
    %vm695 = vcmask 1046534
    %v696 = vsel %vm695, %v694, %v693
    %v697 = vrot.slane %v491, 1
    %vm698 = vcmask 1047559
    %v699 = vsel %vm698, %v697, %v696
    %v700 = vrot.slane %v474, 7
    %v701 = vsel %vm680, %v700, %v471
    %v702 = vrot.slane %v477, 6
    %v703 = vsel %vm683, %v702, %v701
    %v704 = vrot.slane %v480, 5
    %v705 = vsel %vm686, %v704, %v703
    %v706 = vrot.slane %v483, 4
    %v707 = vsel %vm689, %v706, %v705
    %v708 = vrot.slane %v486, 3
    %v709 = vsel %vm692, %v708, %v707
    %v710 = vrot.slane %v489, 2
    %v711 = vsel %vm695, %v710, %v709
    %v712 = vrot.slane %v492, 1
    %v713 = vsel %vm698, %v712, %v711
    %v714 = vrot.slane %v475, 7
    %v715 = vsel %vm680, %v714, %v472
    %v716 = vrot.slane %v478, 6
    %v717 = vsel %vm683, %v716, %v715
    %v718 = vrot.slane %v481, 5
    %v719 = vsel %vm686, %v718, %v717
    %v720 = vrot.slane %v484, 4
    %v721 = vsel %vm689, %v720, %v719
    %v722 = vrot.slane %v487, 3
    %v723 = vsel %vm692, %v722, %v721
    %v724 = vrot.slane %v490, 2
    %v725 = vsel %vm695, %v724, %v723
    %v726 = vrot.slane %v493, 1
    %v727 = vsel %vm698, %v726, %v725
    %731 = vmatprep.subr.mxu0 %v495
    %732 = vmatpush1.msra.mxu0 %v494
    %733 = vmatprep.subr.mxu0 %v498
    %734 = vmatpush1.msra.mxu0 %v497
    %735 = vmatprep.subr.mxu0 %v501
    %736 = vmatpush1.msra.mxu0 %v500
    %737 = vmatprep.subr.mxu0 %v504
    %738 = vmatpush1.msra.mxu0 %v503
    %739 = vmatprep.subr.mxu0 %v507
    %740 = vmatpush1.msra.mxu0 %v506
    %741 = vmatprep.subr.mxu0 %v510
    %742 = vmatpush1.msra.mxu0 %v509
    %743 = vmatprep.subr.mxu0 %v513
    %744 = vmatpush1.msra.mxu0 %v512
    %745 = vmatprep.subr.mxu0 %v516
    %746 = vmatpush1.msra.mxu0 %v515
    %747 = vmatprep.subr.mxu0 %v519
    %748 = vmatpush1.msra.mxu0 %v518
    %749 = vmatprep.subr.mxu0 %v522
    %750 = vmatpush1.msra.mxu0 %v521
    %751 = vmatprep.subr.mxu0 %v525
    %752 = vmatpush1.msra.mxu0 %v524
    %753 = vmatprep.subr.mxu0 %v528
    %754 = vmatpush1.msra.mxu0 %v527
    %755 = vmatprep.subr.mxu0 %v531
    %756 = vmatpush1.msra.mxu0 %v530
    %757 = vmatprep.subr.mxu0 %v534
    %758 = vmatpush1.msra.mxu0 %v533
    %759 = vmatprep.subr.mxu0 %v537
    %760 = vmatpush1.msra.mxu0 %v536
    %761 = vmatprep.subr.mxu0 %v540
    %762 = vmatpush1.msra.mxu0 %v539
    %763 = vmatprep.subr.mxu0 %v543
    %764 = vmatpush1.msra.mxu0 %v542
    %765 = vmatprep.subr.mxu0 %v546
    %766 = vmatpush1.msra.mxu0 %v545
    %767 = vmatprep.subr.mxu0 %v549
    %768 = vmatpush1.msra.mxu0 %v548
    %769 = vmatprep.subr.mxu0 %v552
    %770 = vmatpush1.msra.mxu0 %v551
    %771 = vmatprep.subr.mxu0 %v555
    %772 = vmatpush1.msra.mxu0 %v554
    %773 = vmatprep.subr.mxu0 %v558
    %774 = vmatpush1.msra.mxu0 %v557
    %775 = vmatprep.subr.mxu0 %v561
    %776 = vmatpush1.msra.mxu0 %v560
    %777 = vmatprep.subr.mxu0 %v564
    %778 = vmatpush1.msra.mxu0 %v563
    %779 = vmatprep.subr.mxu0 %v567
    %780 = vmatpush1.msra.mxu0 %v566
    %781 = vmatprep.subr.mxu0 %v570
    %782 = vmatpush1.msra.mxu0 %v569
    %783 = vmatprep.subr.mxu0 %v573
    %784 = vmatpush1.msra.mxu0 %v572
    %785 = vmatprep.subr.mxu0 %v576
    %786 = vmatpush1.msra.mxu0 %v575
    %787 = vmatprep.subr.mxu0 %v579
    %788 = vmatpush1.msra.mxu0 %v578
    %789 = vmatprep.subr.mxu0 %v582
    %790 = vmatpush1.msra.mxu0 %v581
    %791 = vmatprep.subr.mxu0 %v585
    %792 = vmatpush1.msra.mxu0 %v584
    %793 = vmatprep.subr.mxu0 %v588
    %794 = vmatpush1.msra.mxu0 %v587
    %795 = vmatprep.mubr.f32.mxu0 %v713
    %796 = vmatmul.mubr.f32.gmra.mrb[0].mxu0 %v699
    %v797 = vpop.f32.mrb[0].mxu0
    %v798 = vadd.f32 %v643, %v797
    %v799 = vpop.f32.mrb[0].mxu0
    %v800 = vadd.f32 %v647, %v799
    %801 = vdwg.mxu0
    %802 = vmatprep.subr.mxu0 %v591
    %803 = vmatpush1.msra.mxu0 %v590
    %804 = vmatprep.subr.mxu0 %v594
    %805 = vmatpush1.msra.mxu0 %v593
    %806 = vmatprep.subr.mxu0 %v597
    %807 = vmatpush1.msra.mxu0 %v596
    %808 = vmatprep.subr.mxu0 %v600
    %809 = vmatpush1.msra.mxu0 %v599
    %810 = vmatprep.subr.mxu0 %v603
    %811 = vmatpush1.msra.mxu0 %v602
    %812 = vmatprep.subr.mxu0 %v606
    %813 = vmatpush1.msra.mxu0 %v605
    %814 = vmatprep.subr.mxu0 %v609
    %815 = vmatpush1.msra.mxu0 %v608
    %816 = vmatprep.subr.mxu0 %v612
    %817 = vmatpush1.msra.mxu0 %v611
    %818 = vmatprep.subr.mxu0 %v615
    %819 = vmatpush1.msra.mxu0 %v614
    %820 = vmatprep.subr.mxu0 %v618
    %821 = vmatpush1.msra.mxu0 %v617
    %822 = vmatprep.subr.mxu0 %v621
    %823 = vmatpush1.msra.mxu0 %v620
    %824 = vmatprep.subr.mxu0 %v624
    %825 = vmatpush1.msra.mxu0 %v623
    %826 = vmatprep.subr.mxu0 %v627
    %827 = vmatpush1.msra.mxu0 %v626
    %828 = vmatprep.subr.mxu0 %v630
    %829 = vmatpush1.msra.mxu0 %v629
    %830 = vmatprep.subr.mxu0 %v633
    %831 = vmatpush1.msra.mxu0 %v632
    %832 = vmatprep.subr.mxu0 %v636
    %833 = vmatpush1.msra.mxu0 %v635
    %834 = vmatprep.subr.mxu0 0.0
    %835 = vmatpush1.msra.mxu0 0.0
    %836 = vmatprep.subr.mxu0 0.0
    %837 = vmatpush1.msra.mxu0 0.0
    %838 = vmatprep.subr.mxu0 0.0
    %839 = vmatpush1.msra.mxu0 0.0
    %840 = vmatprep.subr.mxu0 0.0
    %841 = vmatpush1.msra.mxu0 0.0
    %842 = vmatprep.subr.mxu0 0.0
    %843 = vmatpush1.msra.mxu0 0.0
    %844 = vmatprep.subr.mxu0 0.0
    %845 = vmatpush1.msra.mxu0 0.0
    %846 = vmatprep.subr.mxu0 0.0
    %847 = vmatpush1.msra.mxu0 0.0
    %848 = vmatprep.subr.mxu0 0.0
    %849 = vmatpush1.msra.mxu0 0.0
    %850 = vmatprep.subr.mxu0 0.0
    %851 = vmatpush1.msra.mxu0 0.0
    %852 = vmatprep.subr.mxu0 0.0
    %853 = vmatpush1.msra.mxu0 0.0
    %854 = vmatprep.subr.mxu0 0.0
    %855 = vmatpush1.msra.mxu0 0.0
    %856 = vmatprep.subr.mxu0 0.0
    %857 = vmatpush1.msra.mxu0 0.0
    %858 = vmatprep.subr.mxu0 0.0
    %859 = vmatpush1.msra.mxu0 0.0
    %860 = vmatprep.subr.mxu0 0.0
    %861 = vmatpush1.msra.mxu0 0.0
    %862 = vmatprep.subr.mxu0 0.0
    %863 = vmatpush1.msra.mxu0 0.0
    %864 = vmatprep.subr.mxu0 0.0
    %865 = vmatpush1.msra.mxu0 0.0
    %866 = vmatprep.mubr.f32.mxu0 0.0
    %867 = vmatmul.mubr.f32.gmra.mrb[0].mxu0 %v727
    %v868 = vpop.f32.mrb[0].mxu0
    %v869 = vadd.f32 %v798, %v868
    %v870 = vpop.f32.mrb[0].mxu0
    %v871 = vadd.f32 %v800, %v870
    %872 = vdwg.mxu0
    %873 = vmatprep.subr.mxu0 0.0
    %874 = vmatpush1.msra.mxu0 %v496
    %875 = vmatprep.subr.mxu0 0.0
    %876 = vmatpush1.msra.mxu0 %v499
    %877 = vmatprep.subr.mxu0 0.0
    %878 = vmatpush1.msra.mxu0 %v502
    %879 = vmatprep.subr.mxu0 0.0
    %880 = vmatpush1.msra.mxu0 %v505
    %881 = vmatprep.subr.mxu0 0.0
    %882 = vmatpush1.msra.mxu0 %v508
    %883 = vmatprep.subr.mxu0 0.0
    %884 = vmatpush1.msra.mxu0 %v511
    %885 = vmatprep.subr.mxu0 0.0
    %886 = vmatpush1.msra.mxu0 %v514
    %887 = vmatprep.subr.mxu0 0.0
    %888 = vmatpush1.msra.mxu0 %v517
    %889 = vmatprep.subr.mxu0 0.0
    %890 = vmatpush1.msra.mxu0 %v520
    %891 = vmatprep.subr.mxu0 0.0
    %892 = vmatpush1.msra.mxu0 %v523
    %893 = vmatprep.subr.mxu0 0.0
    %894 = vmatpush1.msra.mxu0 %v526
    %895 = vmatprep.subr.mxu0 0.0
    %896 = vmatpush1.msra.mxu0 %v529
    %897 = vmatprep.subr.mxu0 0.0
    %898 = vmatpush1.msra.mxu0 %v532
    %899 = vmatprep.subr.mxu0 0.0
    %900 = vmatpush1.msra.mxu0 %v535
    %901 = vmatprep.subr.mxu0 0.0
    %902 = vmatpush1.msra.mxu0 %v538
    %903 = vmatprep.subr.mxu0 0.0
    %904 = vmatpush1.msra.mxu0 %v541
    %905 = vmatprep.subr.mxu0 0.0
    %906 = vmatpush1.msra.mxu0 %v544
    %907 = vmatprep.subr.mxu0 0.0
    %908 = vmatpush1.msra.mxu0 %v547
    %909 = vmatprep.subr.mxu0 0.0
    %910 = vmatpush1.msra.mxu0 %v550
    %911 = vmatprep.subr.mxu0 0.0
    %912 = vmatpush1.msra.mxu0 %v553
    %913 = vmatprep.subr.mxu0 0.0
    %914 = vmatpush1.msra.mxu0 %v556
    %915 = vmatprep.subr.mxu0 0.0
    %916 = vmatpush1.msra.mxu0 %v559
    %917 = vmatprep.subr.mxu0 0.0
    %918 = vmatpush1.msra.mxu0 %v562
    %919 = vmatprep.subr.mxu0 0.0
    %920 = vmatpush1.msra.mxu0 %v565
    %921 = vmatprep.subr.mxu0 0.0
    %922 = vmatpush1.msra.mxu0 %v568
    %923 = vmatprep.subr.mxu0 0.0
    %924 = vmatpush1.msra.mxu0 %v571
    %925 = vmatprep.subr.mxu0 0.0
    %926 = vmatpush1.msra.mxu0 %v574
    %927 = vmatprep.subr.mxu0 0.0
    %928 = vmatpush1.msra.mxu0 %v577
    %929 = vmatprep.subr.mxu0 0.0
    %930 = vmatpush1.msra.mxu0 %v580
    %931 = vmatprep.subr.mxu0 0.0
    %932 = vmatpush1.msra.mxu0 %v583
    %933 = vmatprep.subr.mxu0 0.0
    %934 = vmatpush1.msra.mxu0 %v586
    %935 = vmatprep.subr.mxu0 0.0
    %936 = vmatpush1.msra.mxu0 %v589
    %937 = vmatprep.mubr.f32.mxu0 %v713
    %938 = vmatmul.mubr.f32.gmra.mrb[0].mxu0 %v699
    %v939 = vpop.f32.mrb[0].mxu0
    %v940 = vadd.f32 %v651, %v939
    %v941 = vpop.f32.mrb[0].mxu0
    %942 = vdwg.mxu0
    %943 = vmatprep.subr.mxu0 0.0
    %944 = vmatpush1.msra.mxu0 %v592
    %945 = vmatprep.subr.mxu0 0.0
    %946 = vmatpush1.msra.mxu0 %v595
    %947 = vmatprep.subr.mxu0 0.0
    %948 = vmatpush1.msra.mxu0 %v598
    %949 = vmatprep.subr.mxu0 0.0
    %950 = vmatpush1.msra.mxu0 %v601
    %951 = vmatprep.subr.mxu0 0.0
    %952 = vmatpush1.msra.mxu0 %v604
    %953 = vmatprep.subr.mxu0 0.0
    %954 = vmatpush1.msra.mxu0 %v607
    %955 = vmatprep.subr.mxu0 0.0
    %956 = vmatpush1.msra.mxu0 %v610
    %957 = vmatprep.subr.mxu0 0.0
    %958 = vmatpush1.msra.mxu0 %v613
    %959 = vmatprep.subr.mxu0 0.0
    %960 = vmatpush1.msra.mxu0 %v616
    %961 = vmatprep.subr.mxu0 0.0
    %962 = vmatpush1.msra.mxu0 %v619
    %963 = vmatprep.subr.mxu0 0.0
    %964 = vmatpush1.msra.mxu0 %v622
    %965 = vmatprep.subr.mxu0 0.0
    %966 = vmatpush1.msra.mxu0 %v625
    %967 = vmatprep.subr.mxu0 0.0
    %968 = vmatpush1.msra.mxu0 %v628
    %969 = vmatprep.subr.mxu0 0.0
    %970 = vmatpush1.msra.mxu0 %v631
    %971 = vmatprep.subr.mxu0 0.0
    %972 = vmatpush1.msra.mxu0 %v634
    %973 = vmatprep.subr.mxu0 0.0
    %974 = vmatpush1.msra.mxu0 %v637
    %975 = vmatprep.subr.mxu0 0.0
    %976 = vmatpush1.msra.mxu0 0.0
    %977 = vmatprep.subr.mxu0 0.0
    %978 = vmatpush1.msra.mxu0 0.0
    %979 = vmatprep.subr.mxu0 0.0
    %980 = vmatpush1.msra.mxu0 0.0
    %981 = vmatprep.subr.mxu0 0.0
    %982 = vmatpush1.msra.mxu0 0.0
    %983 = vmatprep.subr.mxu0 0.0
    %984 = vmatpush1.msra.mxu0 0.0
    %985 = vmatprep.subr.mxu0 0.0
    %986 = vmatpush1.msra.mxu0 0.0
    %987 = vmatprep.subr.mxu0 0.0
    %988 = vmatpush1.msra.mxu0 0.0
    %989 = vmatprep.subr.mxu0 0.0
    %990 = vmatpush1.msra.mxu0 0.0
    %991 = vmatprep.subr.mxu0 0.0
    %992 = vmatpush1.msra.mxu0 0.0
    %993 = vmatprep.subr.mxu0 0.0
    %994 = vmatpush1.msra.mxu0 0.0
    %995 = vmatprep.subr.mxu0 0.0
    %996 = vmatpush1.msra.mxu0 0.0
    %997 = vmatprep.subr.mxu0 0.0
    %998 = vmatpush1.msra.mxu0 0.0
    %999 = vmatprep.subr.mxu0 0.0
    %1000 = vmatpush1.msra.mxu0 0.0
    %1001 = vmatprep.subr.mxu0 0.0
    %1002 = vmatpush1.msra.mxu0 0.0
    %1003 = vmatprep.subr.mxu0 0.0
    %1004 = vmatpush1.msra.mxu0 0.0
    %1005 = vmatprep.subr.mxu0 0.0
    %1006 = vmatpush1.msra.mxu0 0.0
    %1007 = vmatprep.mubr.f32.mxu0 0.0
    %1008 = vmatmul.mubr.f32.gmra.mrb[0].mxu0 %v727
    %v1009 = vpop.f32.mrb[0].mxu0
    %v1010 = vadd.f32 %v940, %v1009
    %v1011 = vpop.f32.mrb[0].mxu0
    %1012 = vdwg.mxu0
    %v1013 = vmax.f32 %v869, 0.0
    %v1014 = vmax.f32 %v871, 0.0
    %v1015 = vmax.f32 %v1010, 0.0
    %v1016 = vld [vmem:[#allocation8] sm:$0xff]
    %v1017 = vld [vmem:[#allocation8 + $0x8] sm:$0xff]
    %v1018 = vld [vmem:[#allocation8 + $0x10] sm:$0xff]
    %v1019 = vld [vmem:[#allocation8 + $0x18] sm:$0xff]
    %v1020 = vld [vmem:[#allocation8 + $0x20] sm:$0xff]
    %v1021 = vld [vmem:[#allocation8 + $0x28] sm:$0xff]
    %v1022 = vld [vmem:[#allocation8 + $0x30] sm:$0xff]
    %v1023 = vld [vmem:[#allocation8 + $0x38] sm:$0xff]
    %v1024 = vld [vmem:[#allocation8 + $0x40] sm:$0xff]
    %v1025 = vld [vmem:[#allocation8 + $0x48] sm:$0xff]
    %v1026 = vld [vmem:[#allocation8 + $0x50] sm:$0xff]
    %v1027 = vld [vmem:[#allocation8 + $0x58] sm:$0xff]
    %v1028 = vld [vmem:[#allocation8 + $0x60] sm:$0xff]
    %v1029 = vld [vmem:[#allocation8 + $0x68] sm:$0xff]
    %v1030 = vld [vmem:[#allocation8 + $0x70] sm:$0xff]
    %v1031 = vld [vmem:[#allocation8 + $0x78] sm:$0xff]
    %v1032 = vld [vmem:[#allocation8 + $0x80] sm:$0xff]
    %v1033 = vld [vmem:[#allocation8 + $0x88] sm:$0xff]
    %v1034 = vld [vmem:[#allocation8 + $0x90] sm:$0xff]
    %v1035 = vld [vmem:[#allocation8 + $0x98] sm:$0xff]
    %v1036 = vld [vmem:[#allocation8 + $0xa0] sm:$0xff]
    %v1037 = vld [vmem:[#allocation8 + $0xa8] sm:$0xff]
    %v1038 = vld [vmem:[#allocation8 + $0xb0] sm:$0xff]
    %v1039 = vld [vmem:[#allocation8 + $0xb8] sm:$0xff]
    %v1040 = vld [vmem:[#allocation8 + $0xc0] sm:$0xff]
    %v1041 = vld [vmem:[#allocation8 + $0xc8] sm:$0xff]
    %v1042 = vld [vmem:[#allocation8 + $0xd0] sm:$0xff]
    %v1043 = vld [vmem:[#allocation8 + $0xd8] sm:$0xff]
    %v1044 = vld [vmem:[#allocation8 + $0xe0] sm:$0xff]
    %v1045 = vld [vmem:[#allocation8 + $0xe8] sm:$0xff]
    %v1046 = vld [vmem:[#allocation8 + $0xf0] sm:$0xff]
    %v1047 = vld [vmem:[#allocation8 + $0xf8] sm:$0xff]
    %v1048 = vld [vmem:[#allocation8 + $0x100] sm:$0xff]
    %v1049 = vld [vmem:[#allocation8 + $0x108] sm:$0xff]
    %v1050 = vld [vmem:[#allocation8 + $0x110] sm:$0xff]
    %v1051 = vld [vmem:[#allocation8 + $0x118] sm:$0xff]
    %v1052 = vld [vmem:[#allocation8 + $0x120] sm:$0xff]
    %v1053 = vld [vmem:[#allocation8 + $0x128] sm:$0xff]
    %v1054 = vld [vmem:[#allocation8 + $0x130] sm:$0xff]
    %v1055 = vld [vmem:[#allocation8 + $0x138] sm:$0xff]
    %v1056 = vld [vmem:[#allocation8 + $0x140] sm:$0xff]
    %v1057 = vld [vmem:[#allocation8 + $0x148] sm:$0xff]
    %v1058 = vld [vmem:[#allocation8 + $0x150] sm:$0xff]
    %v1059 = vld [vmem:[#allocation8 + $0x158] sm:$0xff]
    %v1060 = vld [vmem:[#allocation8 + $0x160] sm:$0xff]
    %v1061 = vld [vmem:[#allocation8 + $0x168] sm:$0xff]
    %v1062 = vld [vmem:[#allocation8 + $0x170] sm:$0xff]
    %v1063 = vld [vmem:[#allocation8 + $0x178] sm:$0xff]
    %v1064 = vld [vmem:[#allocation8 + $0x180] sm:$0xff]
    %v1065 = vld [vmem:[#allocation8 + $0x188] sm:$0xff]
    %v1066 = vld [vmem:[#allocation8 + $0x190] sm:$0xff]
    %v1067 = vld [vmem:[#allocation8 + $0x198] sm:$0xff]
    %v1068 = vld [vmem:[#allocation8 + $0x1a0] sm:$0xff]
    %v1069 = vld [vmem:[#allocation8 + $0x1a8] sm:$0xff]
    %v1070 = vld [vmem:[#allocation8 + $0x1b0] sm:$0xff]
    %v1071 = vld [vmem:[#allocation8 + $0x1b8] sm:$0xff]
    %v1072 = vld [vmem:[#allocation8 + $0x1c0] sm:$0xff]
    %v1073 = vld [vmem:[#allocation8 + $0x1c8] sm:$0xff]
    %v1074 = vld [vmem:[#allocation8 + $0x1d0] sm:$0xff]
    %v1075 = vld [vmem:[#allocation8 + $0x1d8] sm:$0xff]
    %v1076 = vld [vmem:[#allocation8 + $0x1e0] sm:$0xff]
    %v1077 = vld [vmem:[#allocation8 + $0x1e8] sm:$0xff]
    %v1078 = vld [vmem:[#allocation8 + $0x1f0] sm:$0xff]
    %v1079 = vld [vmem:[#allocation8 + $0x1f8] sm:$0xff]
    %v1080 = vld [vmem:[#allocation8 + $0x200] sm:$0xff]
    %v1081 = vld [vmem:[#allocation8 + $0x208] sm:$0xff]
    %v1082 = vld [vmem:[#allocation8 + $0x210] sm:$0xff]
    %v1083 = vld [vmem:[#allocation8 + $0x218] sm:$0xff]
    %v1084 = vld [vmem:[#allocation8 + $0x220] sm:$0xff]
    %v1085 = vld [vmem:[#allocation8 + $0x228] sm:$0xff]
    %v1086 = vld [vmem:[#allocation8 + $0x230] sm:$0xff]
    %v1087 = vld [vmem:[#allocation8 + $0x238] sm:$0xff]
    %v1088 = vld [vmem:[#allocation8 + $0x240] sm:$0xff]
    %v1089 = vld [vmem:[#allocation8 + $0x248] sm:$0xff]
    %v1090 = vld [vmem:[#allocation8 + $0x250] sm:$0xff]
    %v1091 = vld [vmem:[#allocation8 + $0x258] sm:$0xff]
    %v1092 = vld [vmem:[#allocation8 + $0x260] sm:$0xff]
    %v1093 = vld [vmem:[#allocation8 + $0x268] sm:$0xff]
    %v1094 = vld [vmem:[#allocation8 + $0x270] sm:$0xff]
    %v1095 = vld [vmem:[#allocation8 + $0x278] sm:$0xff]
    %v1096 = vld [vmem:[#allocation8 + $0x280] sm:$0xff]
    %v1097 = vld [vmem:[#allocation8 + $0x288] sm:$0xff]
    %v1098 = vld [vmem:[#allocation8 + $0x290] sm:$0xff]
    %v1099 = vld [vmem:[#allocation8 + $0x298] sm:$0xff]
    %v1100 = vld [vmem:[#allocation8 + $0x2a0] sm:$0xff]
    %v1101 = vld [vmem:[#allocation8 + $0x2a8] sm:$0xff]
    %v1102 = vld [vmem:[#allocation8 + $0x2b0] sm:$0xff]
    %v1103 = vld [vmem:[#allocation8 + $0x2b8] sm:$0xff]
    %v1104 = vld [vmem:[#allocation8 + $0x2c0] sm:$0xff]
    %v1105 = vld [vmem:[#allocation8 + $0x2c8] sm:$0xff]
    %v1106 = vld [vmem:[#allocation8 + $0x2d0] sm:$0xff]
    %v1107 = vld [vmem:[#allocation8 + $0x2d8] sm:$0xff]
    %v1108 = vld [vmem:[#allocation8 + $0x2e0] sm:$0xff]
    %v1109 = vld [vmem:[#allocation8 + $0x2e8] sm:$0xff]
    %v1110 = vld [vmem:[#allocation8 + $0x2f0] sm:$0xff]
    %v1111 = vld [vmem:[#allocation8 + $0x2f8] sm:$0xff]
    %v1112 = vld [vmem:[#allocation8 + $0x300] sm:$0xff]
    %v1113 = vld [vmem:[#allocation8 + $0x308] sm:$0xff]
    %v1114 = vld [vmem:[#allocation8 + $0x310] sm:$0xff]
    %v1115 = vld [vmem:[#allocation8 + $0x318] sm:$0xff]
    %v1116 = vld [vmem:[#allocation8 + $0x320] sm:$0xff]
    %v1117 = vld [vmem:[#allocation8 + $0x328] sm:$0xff]
    %v1118 = vld [vmem:[#allocation8 + $0x330] sm:$0xff]
    %v1119 = vld [vmem:[#allocation8 + $0x338] sm:$0xff]
    %v1120 = vld [vmem:[#allocation8 + $0x340] sm:$0xff]
    %v1121 = vld [vmem:[#allocation8 + $0x348] sm:$0xff]
    %v1122 = vld [vmem:[#allocation8 + $0x350] sm:$0xff]
    %v1123 = vld [vmem:[#allocation8 + $0x358] sm:$0xff]
    %v1124 = vld [vmem:[#allocation8 + $0x360] sm:$0xff]
    %v1125 = vld [vmem:[#allocation8 + $0x368] sm:$0xff]
    %v1126 = vld [vmem:[#allocation8 + $0x370] sm:$0xff]
    %v1127 = vld [vmem:[#allocation8 + $0x378] sm:$0xff]
    %v1128 = vld [vmem:[#allocation8 + $0x380] sm:$0xff]
    %v1129 = vld [vmem:[#allocation8 + $0x388] sm:$0xff]
    %v1130 = vld [vmem:[#allocation8 + $0x390] sm:$0xff]
    %v1131 = vld [vmem:[#allocation8 + $0x398] sm:$0xff]
    %v1132 = vld [vmem:[#allocation8 + $0x3a0] sm:$0xff]
    %v1133 = vld [vmem:[#allocation8 + $0x3a8] sm:$0xff]
    %v1134 = vld [vmem:[#allocation8 + $0x3b0] sm:$0xff]
    %v1135 = vld [vmem:[#allocation8 + $0x3b8] sm:$0xff]
    %v1136 = vld [vmem:[#allocation8 + $0x3c0] sm:$0xff]
    %v1137 = vld [vmem:[#allocation8 + $0x3c8] sm:$0xff]
    %v1138 = vld [vmem:[#allocation8 + $0x3d0] sm:$0xff]
    %v1139 = vld [vmem:[#allocation8 + $0x3d8] sm:$0xff]
    %v1140 = vld [vmem:[#allocation8 + $0x3e0] sm:$0xff]
    %v1141 = vld [vmem:[#allocation8 + $0x3e8] sm:$0xff]
    %v1142 = vld [vmem:[#allocation8 + $0x3f0] sm:$0xff]
    %v1143 = vld [vmem:[#allocation8 + $0x3f8] sm:$0xff]
    %v1144 = vld [vmem:[#allocation8 + $0x400] sm:$0xff]
    %v1145 = vld [vmem:[#allocation8 + $0x408] sm:$0xff]
    %v1146 = vld [vmem:[#allocation8 + $0x410] sm:$0xff]
    %v1147 = vld [vmem:[#allocation8 + $0x418] sm:$0xff]
    %v1148 = vld [vmem:[#allocation8 + $0x420] sm:$0xff]
    %v1149 = vld [vmem:[#allocation8 + $0x428] sm:$0xff]
    %v1150 = vld [vmem:[#allocation8 + $0x430] sm:$0xff]
    %v1151 = vld [vmem:[#allocation8 + $0x438] sm:$0xff]
    %v1152 = vld [vmem:[#allocation8 + $0x440] sm:$0xff]
    %v1153 = vld [vmem:[#allocation8 + $0x448] sm:$0xff]
    %v1154 = vld [vmem:[#allocation8 + $0x450] sm:$0xff]
    %v1155 = vld [vmem:[#allocation8 + $0x458] sm:$0xff]
    %v1156 = vld [vmem:[#allocation8 + $0x460] sm:$0xff]
    %v1157 = vld [vmem:[#allocation8 + $0x468] sm:$0xff]
    %v1158 = vld [vmem:[#allocation8 + $0x470] sm:$0xff]
    %v1159 = vld [vmem:[#allocation8 + $0x478] sm:$0xff]
    %v1160 = vld [vmem:[%s5] sm:$0x7]
    %v1162 = vlaneseq
    %v1163 = vshrl.u32 %v1162, 7
    %v1164 = vsub.s32 0, %v1163
    %v1165 = vrot.slane %v1160, %v1164
    %v1166 = vlaneseq
    %v1167 = vshrl.u32 %v1166, 7
    %v1168 = vsub.s32 1, %v1167
    %v1169 = vrot.slane %v1160, %v1168
    %v1170 = vlaneseq
    %v1171 = vshrl.u32 %v1170, 7
    %v1172 = vsub.s32 2, %v1171
    %v1173 = vrot.slane %v1160, %v1172
    %1177 = vmatprep.subr.mxu0 %v1017
    %1178 = vmatpush1.msra.mxu0 %v1016
    %1179 = vmatprep.subr.mxu0 %v1020
    %1180 = vmatpush1.msra.mxu0 %v1019
    %1181 = vmatprep.subr.mxu0 %v1023
    %1182 = vmatpush1.msra.mxu0 %v1022
    %1183 = vmatprep.subr.mxu0 %v1026
    %1184 = vmatpush1.msra.mxu0 %v1025
    %1185 = vmatprep.subr.mxu0 %v1029
    %1186 = vmatpush1.msra.mxu0 %v1028
    %1187 = vmatprep.subr.mxu0 %v1032
    %1188 = vmatpush1.msra.mxu0 %v1031
    %1189 = vmatprep.subr.mxu0 %v1035
    %1190 = vmatpush1.msra.mxu0 %v1034
    %1191 = vmatprep.subr.mxu0 %v1038
    %1192 = vmatpush1.msra.mxu0 %v1037
    %1193 = vmatprep.subr.mxu0 %v1041
    %1194 = vmatpush1.msra.mxu0 %v1040
    %1195 = vmatprep.subr.mxu0 %v1044
    %1196 = vmatpush1.msra.mxu0 %v1043
    %1197 = vmatprep.subr.mxu0 %v1047
    %1198 = vmatpush1.msra.mxu0 %v1046
    %1199 = vmatprep.subr.mxu0 %v1050
    %1200 = vmatpush1.msra.mxu0 %v1049
    %1201 = vmatprep.subr.mxu0 %v1053
    %1202 = vmatpush1.msra.mxu0 %v1052
    %1203 = vmatprep.subr.mxu0 %v1056
    %1204 = vmatpush1.msra.mxu0 %v1055
    %1205 = vmatprep.subr.mxu0 %v1059
    %1206 = vmatpush1.msra.mxu0 %v1058
    %1207 = vmatprep.subr.mxu0 %v1062
    %1208 = vmatpush1.msra.mxu0 %v1061
    %1209 = vmatprep.subr.mxu0 %v1065
    %1210 = vmatpush1.msra.mxu0 %v1064
    %1211 = vmatprep.subr.mxu0 %v1068
    %1212 = vmatpush1.msra.mxu0 %v1067
    %1213 = vmatprep.subr.mxu0 %v1071
    %1214 = vmatpush1.msra.mxu0 %v1070
    %1215 = vmatprep.subr.mxu0 %v1074
    %1216 = vmatpush1.msra.mxu0 %v1073
    %1217 = vmatprep.subr.mxu0 %v1077
    %1218 = vmatpush1.msra.mxu0 %v1076
    %1219 = vmatprep.subr.mxu0 %v1080
    %1220 = vmatpush1.msra.mxu0 %v1079
    %1221 = vmatprep.subr.mxu0 %v1083
    %1222 = vmatpush1.msra.mxu0 %v1082
    %1223 = vmatprep.subr.mxu0 %v1086
    %1224 = vmatpush1.msra.mxu0 %v1085
    %1225 = vmatprep.subr.mxu0 %v1089
    %1226 = vmatpush1.msra.mxu0 %v1088
    %1227 = vmatprep.subr.mxu0 %v1092
    %1228 = vmatpush1.msra.mxu0 %v1091
    %1229 = vmatprep.subr.mxu0 %v1095
    %1230 = vmatpush1.msra.mxu0 %v1094
    %1231 = vmatprep.subr.mxu0 %v1098
    %1232 = vmatpush1.msra.mxu0 %v1097
    %1233 = vmatprep.subr.mxu0 %v1101
    %1234 = vmatpush1.msra.mxu0 %v1100
    %1235 = vmatprep.subr.mxu0 %v1104
    %1236 = vmatpush1.msra.mxu0 %v1103
    %1237 = vmatprep.subr.mxu0 %v1107
    %1238 = vmatpush1.msra.mxu0 %v1106
    %1239 = vmatprep.subr.mxu0 %v1110
    %1240 = vmatpush1.msra.mxu0 %v1109
    %1241 = vmatprep.mubr.f32.mxu0 %v1014
    %1242 = vmatmul.mubr.f32.gmra.mrb[0].mxu0 %v1013
    %v1243 = vpop.f32.mrb[0].mxu0
    %v1244 = vadd.f32 %v1165, %v1243
    %v1245 = vpop.f32.mrb[0].mxu0
    %v1246 = vadd.f32 %v1169, %v1245
    %1247 = vdwg.mxu0
    %1248 = vmatprep.subr.mxu0 %v1113
    %1249 = vmatpush1.msra.mxu0 %v1112
    %1250 = vmatprep.subr.mxu0 %v1116
    %1251 = vmatpush1.msra.mxu0 %v1115
    %1252 = vmatprep.subr.mxu0 %v1119
    %1253 = vmatpush1.msra.mxu0 %v1118
    %1254 = vmatprep.subr.mxu0 %v1122
    %1255 = vmatpush1.msra.mxu0 %v1121
    %1256 = vmatprep.subr.mxu0 %v1125
    %1257 = vmatpush1.msra.mxu0 %v1124
    %1258 = vmatprep.subr.mxu0 %v1128
    %1259 = vmatpush1.msra.mxu0 %v1127
    %1260 = vmatprep.subr.mxu0 %v1131
    %1261 = vmatpush1.msra.mxu0 %v1130
    %1262 = vmatprep.subr.mxu0 %v1134
    %1263 = vmatpush1.msra.mxu0 %v1133
    %1264 = vmatprep.subr.mxu0 %v1137
    %1265 = vmatpush1.msra.mxu0 %v1136
    %1266 = vmatprep.subr.mxu0 %v1140
    %1267 = vmatpush1.msra.mxu0 %v1139
    %1268 = vmatprep.subr.mxu0 %v1143
    %1269 = vmatpush1.msra.mxu0 %v1142
    %1270 = vmatprep.subr.mxu0 %v1146
    %1271 = vmatpush1.msra.mxu0 %v1145
    %1272 = vmatprep.subr.mxu0 %v1149
    %1273 = vmatpush1.msra.mxu0 %v1148
    %1274 = vmatprep.subr.mxu0 %v1152
    %1275 = vmatpush1.msra.mxu0 %v1151
    %1276 = vmatprep.subr.mxu0 %v1155
    %1277 = vmatpush1.msra.mxu0 %v1154
    %1278 = vmatprep.subr.mxu0 %v1158
    %1279 = vmatpush1.msra.mxu0 %v1157
    %1280 = vmatprep.subr.mxu0 0.0
    %1281 = vmatpush1.msra.mxu0 0.0
    %1282 = vmatprep.subr.mxu0 0.0
    %1283 = vmatpush1.msra.mxu0 0.0
    %1284 = vmatprep.subr.mxu0 0.0
    %1285 = vmatpush1.msra.mxu0 0.0
    %1286 = vmatprep.subr.mxu0 0.0
    %1287 = vmatpush1.msra.mxu0 0.0
    %1288 = vmatprep.subr.mxu0 0.0
    %1289 = vmatpush1.msra.mxu0 0.0
    %1290 = vmatprep.subr.mxu0 0.0
    %1291 = vmatpush1.msra.mxu0 0.0
    %1292 = vmatprep.subr.mxu0 0.0
    %1293 = vmatpush1.msra.mxu0 0.0
    %1294 = vmatprep.subr.mxu0 0.0
    %1295 = vmatpush1.msra.mxu0 0.0
    %1296 = vmatprep.subr.mxu0 0.0
    %1297 = vmatpush1.msra.mxu0 0.0
    %1298 = vmatprep.subr.mxu0 0.0
    %1299 = vmatpush1.msra.mxu0 0.0
    %1300 = vmatprep.subr.mxu0 0.0
    %1301 = vmatpush1.msra.mxu0 0.0
    %1302 = vmatprep.subr.mxu0 0.0
    %1303 = vmatpush1.msra.mxu0 0.0
    %1304 = vmatprep.subr.mxu0 0.0
    %1305 = vmatpush1.msra.mxu0 0.0
    %1306 = vmatprep.subr.mxu0 0.0
    %1307 = vmatpush1.msra.mxu0 0.0
    %1308 = vmatprep.subr.mxu0 0.0
    %1309 = vmatpush1.msra.mxu0 0.0
    %1310 = vmatprep.subr.mxu0 0.0
    %1311 = vmatpush1.msra.mxu0 0.0
    %1312 = vmatprep.mubr.f32.mxu0 0.0
    %1313 = vmatmul.mubr.f32.gmra.mrb[0].mxu0 %v1015
    %v1314 = vpop.f32.mrb[0].mxu0
    %v1315 = vadd.f32 %v1244, %v1314
    %v1316 = vpop.f32.mrb[0].mxu0
    %v1317 = vadd.f32 %v1246, %v1316
    %1318 = vdwg.mxu0
    %1319 = vmatprep.subr.mxu0 0.0
    %1320 = vmatpush1.msra.mxu0 %v1018
    %1321 = vmatprep.subr.mxu0 0.0
    %1322 = vmatpush1.msra.mxu0 %v1021
    %1323 = vmatprep.subr.mxu0 0.0
    %1324 = vmatpush1.msra.mxu0 %v1024
    %1325 = vmatprep.subr.mxu0 0.0
    %1326 = vmatpush1.msra.mxu0 %v1027
    %1327 = vmatprep.subr.mxu0 0.0
    %1328 = vmatpush1.msra.mxu0 %v1030
    %1329 = vmatprep.subr.mxu0 0.0
    %1330 = vmatpush1.msra.mxu0 %v1033
    %1331 = vmatprep.subr.mxu0 0.0
    %1332 = vmatpush1.msra.mxu0 %v1036
    %1333 = vmatprep.subr.mxu0 0.0
    %1334 = vmatpush1.msra.mxu0 %v1039
    %1335 = vmatprep.subr.mxu0 0.0
    %1336 = vmatpush1.msra.mxu0 %v1042
    %1337 = vmatprep.subr.mxu0 0.0
    %1338 = vmatpush1.msra.mxu0 %v1045
    %1339 = vmatprep.subr.mxu0 0.0
    %1340 = vmatpush1.msra.mxu0 %v1048
    %1341 = vmatprep.subr.mxu0 0.0
    %1342 = vmatpush1.msra.mxu0 %v1051
    %1343 = vmatprep.subr.mxu0 0.0
    %1344 = vmatpush1.msra.mxu0 %v1054
    %1345 = vmatprep.subr.mxu0 0.0
    %1346 = vmatpush1.msra.mxu0 %v1057
    %1347 = vmatprep.subr.mxu0 0.0
    %1348 = vmatpush1.msra.mxu0 %v1060
    %1349 = vmatprep.subr.mxu0 0.0
    %1350 = vmatpush1.msra.mxu0 %v1063
    %1351 = vmatprep.subr.mxu0 0.0
    %1352 = vmatpush1.msra.mxu0 %v1066
    %1353 = vmatprep.subr.mxu0 0.0
    %1354 = vmatpush1.msra.mxu0 %v1069
    %1355 = vmatprep.subr.mxu0 0.0
    %1356 = vmatpush1.msra.mxu0 %v1072
    %1357 = vmatprep.subr.mxu0 0.0
    %1358 = vmatpush1.msra.mxu0 %v1075
    %1359 = vmatprep.subr.mxu0 0.0
    %1360 = vmatpush1.msra.mxu0 %v1078
    %1361 = vmatprep.subr.mxu0 0.0
    %1362 = vmatpush1.msra.mxu0 %v1081
    %1363 = vmatprep.subr.mxu0 0.0
    %1364 = vmatpush1.msra.mxu0 %v1084
    %1365 = vmatprep.subr.mxu0 0.0
    %1366 = vmatpush1.msra.mxu0 %v1087
    %1367 = vmatprep.subr.mxu0 0.0
    %1368 = vmatpush1.msra.mxu0 %v1090
    %1369 = vmatprep.subr.mxu0 0.0
    %1370 = vmatpush1.msra.mxu0 %v1093
    %1371 = vmatprep.subr.mxu0 0.0
    %1372 = vmatpush1.msra.mxu0 %v1096
    %1373 = vmatprep.subr.mxu0 0.0
    %1374 = vmatpush1.msra.mxu0 %v1099
    %1375 = vmatprep.subr.mxu0 0.0
    %1376 = vmatpush1.msra.mxu0 %v1102
    %1377 = vmatprep.subr.mxu0 0.0
    %1378 = vmatpush1.msra.mxu0 %v1105
    %1379 = vmatprep.subr.mxu0 0.0
    %1380 = vmatpush1.msra.mxu0 %v1108
    %1381 = vmatprep.subr.mxu0 0.0
    %1382 = vmatpush1.msra.mxu0 %v1111
    %1383 = vmatprep.mubr.f32.mxu0 %v1014
    %1384 = vmatmul.mubr.f32.gmra.mrb[0].mxu0 %v1013
    %v1385 = vpop.f32.mrb[0].mxu0
    %v1386 = vadd.f32 %v1173, %v1385
    %v1387 = vpop.f32.mrb[0].mxu0
    %1388 = vdwg.mxu0
    %1389 = vmatprep.subr.mxu0 0.0
    %1390 = vmatpush1.msra.mxu0 %v1114
    %1391 = vmatprep.subr.mxu0 0.0
    %1392 = vmatpush1.msra.mxu0 %v1117
    %1393 = vmatprep.subr.mxu0 0.0
    %1394 = vmatpush1.msra.mxu0 %v1120
    %1395 = vmatprep.subr.mxu0 0.0
    %1396 = vmatpush1.msra.mxu0 %v1123
    %1397 = vmatprep.subr.mxu0 0.0
    %1398 = vmatpush1.msra.mxu0 %v1126
    %1399 = vmatprep.subr.mxu0 0.0
    %1400 = vmatpush1.msra.mxu0 %v1129
    %1401 = vmatprep.subr.mxu0 0.0
    %1402 = vmatpush1.msra.mxu0 %v1132
    %1403 = vmatprep.subr.mxu0 0.0
    %1404 = vmatpush1.msra.mxu0 %v1135
    %1405 = vmatprep.subr.mxu0 0.0
    %1406 = vmatpush1.msra.mxu0 %v1138
    %1407 = vmatprep.subr.mxu0 0.0
    %1408 = vmatpush1.msra.mxu0 %v1141
    %1409 = vmatprep.subr.mxu0 0.0
    %1410 = vmatpush1.msra.mxu0 %v1144
    %1411 = vmatprep.subr.mxu0 0.0
    %1412 = vmatpush1.msra.mxu0 %v1147
    %1413 = vmatprep.subr.mxu0 0.0
    %1414 = vmatpush1.msra.mxu0 %v1150
    %1415 = vmatprep.subr.mxu0 0.0
    %1416 = vmatpush1.msra.mxu0 %v1153
    %1417 = vmatprep.subr.mxu0 0.0
    %1418 = vmatpush1.msra.mxu0 %v1156
    %1419 = vmatprep.subr.mxu0 0.0
    %1420 = vmatpush1.msra.mxu0 %v1159
    %1421 = vmatprep.subr.mxu0 0.0
    %1422 = vmatpush1.msra.mxu0 0.0
    %1423 = vmatprep.subr.mxu0 0.0
    %1424 = vmatpush1.msra.mxu0 0.0
    %1425 = vmatprep.subr.mxu0 0.0
    %1426 = vmatpush1.msra.mxu0 0.0
    %1427 = vmatprep.subr.mxu0 0.0
    %1428 = vmatpush1.msra.mxu0 0.0
    %1429 = vmatprep.subr.mxu0 0.0
    %1430 = vmatpush1.msra.mxu0 0.0
    %1431 = vmatprep.subr.mxu0 0.0
    %1432 = vmatpush1.msra.mxu0 0.0
    %1433 = vmatprep.subr.mxu0 0.0
    %1434 = vmatpush1.msra.mxu0 0.0
    %1435 = vmatprep.subr.mxu0 0.0
    %1436 = vmatpush1.msra.mxu0 0.0
    %1437 = vmatprep.subr.mxu0 0.0
    %1438 = vmatpush1.msra.mxu0 0.0
    %1439 = vmatprep.subr.mxu0 0.0
    %1440 = vmatpush1.msra.mxu0 0.0
    %1441 = vmatprep.subr.mxu0 0.0
    %1442 = vmatpush1.msra.mxu0 0.0
    %1443 = vmatprep.subr.mxu0 0.0
    %1444 = vmatpush1.msra.mxu0 0.0
    %1445 = vmatprep.subr.mxu0 0.0
    %1446 = vmatpush1.msra.mxu0 0.0
    %1447 = vmatprep.subr.mxu0 0.0
    %1448 = vmatpush1.msra.mxu0 0.0
    %1449 = vmatprep.subr.mxu0 0.0
    %1450 = vmatpush1.msra.mxu0 0.0
    %1451 = vmatprep.subr.mxu0 0.0
    %1452 = vmatpush1.msra.mxu0 0.0
    %1453 = vmatprep.mubr.f32.mxu0 0.0
    %1454 = vmatmul.mubr.f32.gmra.mrb[0].mxu0 %v1015
    %v1455 = vpop.f32.mrb[0].mxu0
    %v1456 = vadd.f32 %v1386, %v1455
    %v1457 = vpop.f32.mrb[0].mxu0
    %1458 = vdwg.mxu0
    %v1459 = vmax.f32 %v1315, 0.0
    %v1460 = vmax.f32 %v1317, 0.0
    %v1461 = vmax.f32 %v1456, 0.0
    %v1462 = vld [vmem:[#allocation10] sm:$0xff]
    %v1463 = vld [vmem:[#allocation10 + $0x8] sm:$0xff]
    %v1464 = vld [vmem:[#allocation10 + $0x10] sm:$0xff]
    %v1465 = vld [vmem:[#allocation10 + $0x18] sm:$0xff]
    %v1466 = vld [vmem:[#allocation10 + $0x20] sm:$0xff]
    %v1467 = vld [vmem:[#allocation10 + $0x28] sm:$0xff]
    %v1468 = vld [vmem:[#allocation10 + $0x30] sm:$0xff]
    %v1469 = vld [vmem:[#allocation10 + $0x38] sm:$0xff]
    %v1470 = vld [vmem:[#allocation10 + $0x40] sm:$0xff]
    %v1471 = vld [vmem:[#allocation10 + $0x48] sm:$0xff]
    %v1472 = vld [vmem:[#allocation10 + $0x50] sm:$0xff]
    %v1473 = vld [vmem:[#allocation10 + $0x58] sm:$0xff]
    %v1474 = vld [vmem:[#allocation10 + $0x60] sm:$0xff]
    %v1475 = vld [vmem:[#allocation10 + $0x68] sm:$0xff]
    %v1476 = vld [vmem:[#allocation10 + $0x70] sm:$0xff]
    %v1477 = vld [vmem:[#allocation10 + $0x78] sm:$0xff]
    %v1478 = vld [vmem:[#allocation10 + $0x80] sm:$0xff]
    %v1479 = vld [vmem:[#allocation10 + $0x88] sm:$0xff]
    %v1480 = vld [vmem:[#allocation10 + $0x90] sm:$0xff]
    %v1481 = vld [vmem:[#allocation10 + $0x98] sm:$0xff]
    %v1482 = vld [vmem:[#allocation10 + $0xa0] sm:$0xff]
    %v1483 = vld [vmem:[#allocation10 + $0xa8] sm:$0xff]
    %v1484 = vld [vmem:[#allocation10 + $0xb0] sm:$0xff]
    %v1485 = vld [vmem:[#allocation10 + $0xb8] sm:$0xff]
    %v1486 = vld [vmem:[#allocation10 + $0xc0] sm:$0xff]
    %v1487 = vld [vmem:[#allocation10 + $0xc8] sm:$0xff]
    %v1488 = vld [vmem:[#allocation10 + $0xd0] sm:$0xff]
    %v1489 = vld [vmem:[#allocation10 + $0xd8] sm:$0xff]
    %v1490 = vld [vmem:[#allocation10 + $0xe0] sm:$0xff]
    %v1491 = vld [vmem:[#allocation10 + $0xe8] sm:$0xff]
    %v1492 = vld [vmem:[#allocation10 + $0xf0] sm:$0xff]
    %v1493 = vld [vmem:[#allocation10 + $0xf8] sm:$0xff]
    %v1494 = vld [vmem:[#allocation10 + $0x100] sm:$0xff]
    %v1495 = vld [vmem:[#allocation10 + $0x108] sm:$0xff]
    %v1496 = vld [vmem:[#allocation10 + $0x110] sm:$0xff]
    %v1497 = vld [vmem:[#allocation10 + $0x118] sm:$0xff]
    %v1498 = vld [vmem:[#allocation10 + $0x120] sm:$0xff]
    %v1499 = vld [vmem:[#allocation10 + $0x128] sm:$0xff]
    %v1500 = vld [vmem:[#allocation10 + $0x130] sm:$0xff]
    %v1501 = vld [vmem:[#allocation10 + $0x138] sm:$0xff]
    %v1502 = vld [vmem:[#allocation10 + $0x140] sm:$0xff]
    %v1503 = vld [vmem:[#allocation10 + $0x148] sm:$0xff]
    %v1504 = vld [vmem:[#allocation10 + $0x150] sm:$0xff]
    %v1505 = vld [vmem:[#allocation10 + $0x158] sm:$0xff]
    %v1506 = vld [vmem:[#allocation10 + $0x160] sm:$0xff]
    %v1507 = vld [vmem:[#allocation10 + $0x168] sm:$0xff]
    %v1508 = vld [vmem:[#allocation10 + $0x170] sm:$0xff]
    %v1509 = vld [vmem:[#allocation10 + $0x178] sm:$0xff]
    %v1510 = vld [vmem:[%s7] sm:$0x1]
    %v1512 = vlaneseq
    %v1513 = vshrl.u32 %v1512, 7
    %v1514 = vsub.s32 0, %v1513
    %v1515 = vrot.slane %v1510, %v1514
    %1517 = vmatprep.subr.mxu0 0.0
    %1518 = vmatpush1.msra.mxu0 %v1462
    %1519 = vmatprep.subr.mxu0 0.0
    %1520 = vmatpush1.msra.mxu0 %v1463
    %1521 = vmatprep.subr.mxu0 0.0
    %1522 = vmatpush1.msra.mxu0 %v1464
    %1523 = vmatprep.subr.mxu0 0.0
    %1524 = vmatpush1.msra.mxu0 %v1465
    %1525 = vmatprep.subr.mxu0 0.0
    %1526 = vmatpush1.msra.mxu0 %v1466
    %1527 = vmatprep.subr.mxu0 0.0
    %1528 = vmatpush1.msra.mxu0 %v1467
    %1529 = vmatprep.subr.mxu0 0.0
    %1530 = vmatpush1.msra.mxu0 %v1468
    %1531 = vmatprep.subr.mxu0 0.0
    %1532 = vmatpush1.msra.mxu0 %v1469
    %1533 = vmatprep.subr.mxu0 0.0
    %1534 = vmatpush1.msra.mxu0 %v1470
    %1535 = vmatprep.subr.mxu0 0.0
    %1536 = vmatpush1.msra.mxu0 %v1471
    %1537 = vmatprep.subr.mxu0 0.0
    %1538 = vmatpush1.msra.mxu0 %v1472
    %1539 = vmatprep.subr.mxu0 0.0
    %1540 = vmatpush1.msra.mxu0 %v1473
    %1541 = vmatprep.subr.mxu0 0.0
    %1542 = vmatpush1.msra.mxu0 %v1474
    %1543 = vmatprep.subr.mxu0 0.0
    %1544 = vmatpush1.msra.mxu0 %v1475
    %1545 = vmatprep.subr.mxu0 0.0
    %1546 = vmatpush1.msra.mxu0 %v1476
    %1547 = vmatprep.subr.mxu0 0.0
    %1548 = vmatpush1.msra.mxu0 %v1477
    %1549 = vmatprep.subr.mxu0 0.0
    %1550 = vmatpush1.msra.mxu0 %v1478
    %1551 = vmatprep.subr.mxu0 0.0
    %1552 = vmatpush1.msra.mxu0 %v1479
    %1553 = vmatprep.subr.mxu0 0.0
    %1554 = vmatpush1.msra.mxu0 %v1480
    %1555 = vmatprep.subr.mxu0 0.0
    %1556 = vmatpush1.msra.mxu0 %v1481
    %1557 = vmatprep.subr.mxu0 0.0
    %1558 = vmatpush1.msra.mxu0 %v1482
    %1559 = vmatprep.subr.mxu0 0.0
    %1560 = vmatpush1.msra.mxu0 %v1483
    %1561 = vmatprep.subr.mxu0 0.0
    %1562 = vmatpush1.msra.mxu0 %v1484
    %1563 = vmatprep.subr.mxu0 0.0
    %1564 = vmatpush1.msra.mxu0 %v1485
    %1565 = vmatprep.subr.mxu0 0.0
    %1566 = vmatpush1.msra.mxu0 %v1486
    %1567 = vmatprep.subr.mxu0 0.0
    %1568 = vmatpush1.msra.mxu0 %v1487
    %1569 = vmatprep.subr.mxu0 0.0
    %1570 = vmatpush1.msra.mxu0 %v1488
    %1571 = vmatprep.subr.mxu0 0.0
    %1572 = vmatpush1.msra.mxu0 %v1489
    %1573 = vmatprep.subr.mxu0 0.0
    %1574 = vmatpush1.msra.mxu0 %v1490
    %1575 = vmatprep.subr.mxu0 0.0
    %1576 = vmatpush1.msra.mxu0 %v1491
    %1577 = vmatprep.subr.mxu0 0.0
    %1578 = vmatpush1.msra.mxu0 %v1492
    %1579 = vmatprep.subr.mxu0 0.0
    %1580 = vmatpush1.msra.mxu0 %v1493
    %1581 = vmatprep.mubr.f32.mxu0 %v1460
    %1582 = vmatmul.mubr.f32.gmra.mrb[0].mxu0 %v1459
    %v1583 = vpop.f32.mrb[0].mxu0
    %v1584 = vadd.f32 %v1515, %v1583
    %v1585 = vpop.f32.mrb[0].mxu0
    %1586 = vdwg.mxu0
    %1587 = vmatprep.subr.mxu0 0.0
    %1588 = vmatpush1.msra.mxu0 %v1494
    %1589 = vmatprep.subr.mxu0 0.0
    %1590 = vmatpush1.msra.mxu0 %v1495
    %1591 = vmatprep.subr.mxu0 0.0
    %1592 = vmatpush1.msra.mxu0 %v1496
    %1593 = vmatprep.subr.mxu0 0.0
    %1594 = vmatpush1.msra.mxu0 %v1497
    %1595 = vmatprep.subr.mxu0 0.0
    %1596 = vmatpush1.msra.mxu0 %v1498
    %1597 = vmatprep.subr.mxu0 0.0
    %1598 = vmatpush1.msra.mxu0 %v1499
    %1599 = vmatprep.subr.mxu0 0.0
    %1600 = vmatpush1.msra.mxu0 %v1500
    %1601 = vmatprep.subr.mxu0 0.0
    %1602 = vmatpush1.msra.mxu0 %v1501
    %1603 = vmatprep.subr.mxu0 0.0
    %1604 = vmatpush1.msra.mxu0 %v1502
    %1605 = vmatprep.subr.mxu0 0.0
    %1606 = vmatpush1.msra.mxu0 %v1503
    %1607 = vmatprep.subr.mxu0 0.0
    %1608 = vmatpush1.msra.mxu0 %v1504
    %1609 = vmatprep.subr.mxu0 0.0
    %1610 = vmatpush1.msra.mxu0 %v1505
    %1611 = vmatprep.subr.mxu0 0.0
    %1612 = vmatpush1.msra.mxu0 %v1506
    %1613 = vmatprep.subr.mxu0 0.0
    %1614 = vmatpush1.msra.mxu0 %v1507
    %1615 = vmatprep.subr.mxu0 0.0
    %1616 = vmatpush1.msra.mxu0 %v1508
    %1617 = vmatprep.subr.mxu0 0.0
    %1618 = vmatpush1.msra.mxu0 %v1509
    %1619 = vmatprep.subr.mxu0 0.0
    %1620 = vmatpush1.msra.mxu0 0.0
    %1621 = vmatprep.subr.mxu0 0.0
    %1622 = vmatpush1.msra.mxu0 0.0
    %1623 = vmatprep.subr.mxu0 0.0
    %1624 = vmatpush1.msra.mxu0 0.0
    %1625 = vmatprep.subr.mxu0 0.0
    %1626 = vmatpush1.msra.mxu0 0.0
    %1627 = vmatprep.subr.mxu0 0.0
    %1628 = vmatpush1.msra.mxu0 0.0
    %1629 = vmatprep.subr.mxu0 0.0
    %1630 = vmatpush1.msra.mxu0 0.0
    %1631 = vmatprep.subr.mxu0 0.0
    %1632 = vmatpush1.msra.mxu0 0.0
    %1633 = vmatprep.subr.mxu0 0.0
    %1634 = vmatpush1.msra.mxu0 0.0
    %1635 = vmatprep.subr.mxu0 0.0
    %1636 = vmatpush1.msra.mxu0 0.0
    %1637 = vmatprep.subr.mxu0 0.0
    %1638 = vmatpush1.msra.mxu0 0.0
    %1639 = vmatprep.subr.mxu0 0.0
    %1640 = vmatpush1.msra.mxu0 0.0
    %1641 = vmatprep.subr.mxu0 0.0
    %1642 = vmatpush1.msra.mxu0 0.0
    %1643 = vmatprep.subr.mxu0 0.0
    %1644 = vmatpush1.msra.mxu0 0.0
    %1645 = vmatprep.subr.mxu0 0.0
    %1646 = vmatpush1.msra.mxu0 0.0
    %1647 = vmatprep.subr.mxu0 0.0
    %1648 = vmatpush1.msra.mxu0 0.0
    %1649 = vmatprep.subr.mxu0 0.0
    %1650 = vmatpush1.msra.mxu0 0.0
    %1651 = vmatprep.mubr.f32.mxu0 0.0
    %1652 = vmatmul.mubr.f32.gmra.mrb[0].mxu0 %v1461
    %v1653 = vpop.f32.mrb[0].mxu0
    %v1654 = vadd.f32 %v1584, %v1653
    %v1655 = vpop.f32.mrb[0].mxu0
    %1656 = vdwg.mxu0
    %1657 = vst [vmem:[#allocation11] sm:$0xff] %v1654
    // Predicated region
    $region54: #{tpu_custom_call.1} parent=1 // pred_check
      _
    $region55: #{tpu_custom_call.1} parent=1 // pred_check_branch
      %1659 = sbr.rel (0) target = $region57
    $region56: #{tpu_custom_call.1} parent=1 // pred_region
      %s1661 = ssub.s32 128, 128
      %1662 = vsyncadd [#allocation4], %s1661
      %s1664 = sshll.u32 [#allocation11], 4
      %s1665 = int_to_ptr.vmem [resolvable:$true] %s1664
      %1667 = dma.vmem_to_hbm [thread:$0]  %s1665, 128, %s8, [#allocation4]
    $region57: #{tpu_custom_call.1} parent=1 // pred_fallthru
      _
    // Predicated region
    $region58: #{tpu_custom_call.1} parent=1 // pred_check
      _
    $region59: #{tpu_custom_call.1} parent=1 // pred_check_branch
      %1669 = sbr.rel (0) target = $region61
    $region60: #{tpu_custom_call.1} parent=1 // pred_region
      %1670 = dma.done [#allocation4], 128
    $region61: #{tpu_custom_call.1} parent=1 // pred_fallthru
      _
    %1671 = vsyncpa [#allocation3], 1
    %1672 = vsyncpa [#allocation6], 1
    %1673 = vsyncpa [#allocation9], 1
    %1674 = vsyncpa [#allocation4], 1

</llo_original>
